<compile_context>
chip_gen: v7x
topology: tpu7x:2x2x1
jax: 0.10.0
libtpu: 0.0.40
codegen_flags: <defaults>
</compile_context>

<pallas_src>
import jax
import jax.numpy as jnp
from jax.experimental import pallas as pl
from jax.experimental.pallas import tpu as pltpu

HIDDEN_LAYERS = 3    # -> Linear(2,H), 2x Linear(H,H), Linear(H,1)
HIDDEN_WIDTH = 32
BATCH = 256
LANE = 128           # lane-axis (batch) alignment
MAX_TILE = 512       # batch tile per grid step (keeps (32,T) activations spill-free)


def mlp_kernel(p_ref, xT_ref, o_ref):
    """Full MLP forward for one batch tile, batch on the lane axis.

    p_ref  : (5, 32, 32) packed params
             [0,:,0:2]=w0, [1]=w1, [2]=w2, [3,:,0]=w3^T, [4,:,0:3]=b0|b1|b2, [4,0,3]=b3
    xT_ref : (2, T)  input, transposed (feature-major)
    o_ref  : (1, T)  lane-dense output
    """
    xT = xT_ref[...]                                        # (2, T)

    # Layer 0: K=2 -> two broadcast multiply-adds on the VPU (skip the MXU).
    h = jnp.tanh(p_ref[0, :, 0:1] * xT[0:1, :]
                 + p_ref[0, :, 1:2] * xT[1:2, :]
                 + p_ref[4, :, 0:1])                        # (32, T)

    # Layers 1 & 2: 32x32 matmuls on the MXU, f32 accumulation, pinned precision.
    h = jnp.tanh(jnp.dot(p_ref[1], h,
                         preferred_element_type=jnp.float32,
                         precision=jax.lax.Precision.HIGHEST)
                 + p_ref[4, :, 1:2])
    h = jnp.tanh(jnp.dot(p_ref[2], h,
                         preferred_element_type=jnp.float32,
                         precision=jax.lax.Precision.HIGHEST)
                 + p_ref[4, :, 2:3])

    # Layer 3: single output row -> elementwise mul + sublane reduce (XLU, no MXU).
    o_ref[...] = (jnp.sum(p_ref[3, :, 0:1] * h, axis=0, keepdims=True)
                  + p_ref[4, 0:1, 3:4])                     # (1, T) dense store


def pack_params(params):
    """Pack the 4 (w, b) PyTorch-layout pairs into one (5, H, H) f32 tensor.

    In a training loop this is done once per parameter update, not per call.
    """
    (w0, b0), (w1, b1), (w2, b2), (w3, b3) = params
    h = w1.shape[0]
    p = jnp.zeros((5, h, h), jnp.float32)
    p = p.at[0, :, :2].set(w0)          # (H, 2) -> slot 0, cols 0..1
    p = p.at[1].set(w1)                 # (H, H)
    p = p.at[2].set(w2)                 # (H, H)
    p = p.at[3, :, 0].set(w3[0])        # w3^T column
    p = p.at[4, :, 0].set(b0)
    p = p.at[4, :, 1].set(b1)
    p = p.at[4, :, 2].set(b2)
    p = p.at[4, 0, 3].set(b3[0])
    return p


def mlp_forward(t, packed, *, max_tile=MAX_TILE):
    """t: (N, 2) f32 collocation points. packed: (5, H, H) from pack_params."""
    n = t.shape[0]
    hw = packed.shape[1]

    # Lane-dense batch tiling: tile multiple of 128, n_pad multiple of tile.
    n128 = max(LANE, ((n + LANE - 1) // LANE) * LANE)
    tile = min(max_tile, n128)
    n_pad = ((n + tile - 1) // tile) * tile

    xT = t.T                                   # single transpose in the wrapper
    if n_pad != n:
        xT = jnp.pad(xT, ((0, 0), (0, n_pad - n)))

    flops_per_pt = 2 * hw * 2 + 2 * (2 * hw * hw) + 2 * hw + 3 * hw + 1
    cost = pl.CostEstimate(
        flops=int(flops_per_pt * n_pad),
        transcendentals=int(3 * hw * n_pad),
        bytes_accessed=int(3 * 4 * n_pad + packed.size * 4),
    )

    out_T = pl.pallas_call(
        mlp_kernel,
        out_shape=jax.ShapeDtypeStruct((1, n_pad), jnp.float32),
        grid=(n_pad // tile,),
        in_specs=[
            pl.BlockSpec((5, hw, hw), lambda i: (0, 0, 0)),   # params: resident, 1 DMA
            pl.BlockSpec((2, tile), lambda i: (0, i)),        # x^T batch tile
        ],
        out_specs=pl.BlockSpec((1, tile), lambda i: (0, i)),
        compiler_params=pltpu.CompilerParams(
            dimension_semantics=("parallel",)),               # v7x: 2 TCs
        cost_estimate=cost,
    )(packed, xT)

    out = out_T.T                              # (n_pad, 1)
    if n_pad != n:
        out = out[:n]
    return out                                 # (N, 1)


def init_params(key, hidden_layers, hidden_width):
    """nn.Linear-style init: U(-1/sqrt(fan_in), 1/sqrt(fan_in)), w in (out, in)."""
    dims = [2] + [hidden_width] * hidden_layers + [1]
    params = []
    for fan_in, fan_out in zip(dims[:-1], dims[1:]):
        key, kw, kb = jax.random.split(key, 3)
        bound = 1.0 / jnp.sqrt(float(fan_in))
        w = jax.random.uniform(kw, (fan_out, fan_in), jnp.float32, -bound, bound)
        b = jax.random.uniform(kb, (fan_out,), jnp.float32, -bound, bound)
        params.append((w, b))
    return params
    # NOTE: the PyTorch module also owns self.params = Parameter(rand(2)) which
    # is unused in forward(), so it is intentionally not part of the kernel.


def mlp_reference(t, params):
    h = t
    for i, (w, b) in enumerate(params):
        # Pin precision so f32 MXU accumulation in the kernel and the reference agree.
        h = jnp.dot(h, w.T, precision=jax.lax.Precision.HIGHEST) + b
        if i < len(params) - 1:
            h = jnp.tanh(h)
    return h


if __name__ == "__main__":
    key = jax.random.PRNGKey(0)
    kp, kx = jax.random.split(key)
    params = init_params(kp, HIDDEN_LAYERS, HIDDEN_WIDTH)
    packed = pack_params(params)
    t = jax.random.uniform(kx, (BATCH, 2), jnp.float32)   # collocation points (x, t)

    out = jax.block_until_ready(mlp_forward(t, packed))

    ref = mlp_reference(t, params)
    assert out.shape == (BATCH, 1)
    assert jnp.allclose(out, ref, atol=1e-5, rtol=1e-5), "mismatch vs reference"
    print("KERNEL_OK")
</pallas_src>

<mosaic_0001>
module attributes {stable_mosaic.version = 11 : i64} {
  func.func @mlp_kernel(%arg0: i32, %arg1: memref<5x32x32xf32, #tpu.memory_space<vmem>>, %arg2: memref<2x256xf32, #tpu.memory_space<vmem>>, %arg3: memref<1x256xf32, #tpu.memory_space<vmem>>) attributes {dimension_semantics = [#tpu.dimension_semantics<parallel>], iteration_bounds = array<i64: 1>, scalar_prefetch = 0 : i64, scratch_operands = 0 : i64, tpu.core_type = #tpu.core_type<tc>, window_params = [{pipeline_mode = #tpu.pipeline_mode<synchronous>, transform_indices = @transform_0, window_bounds = array<i64: 5, 32, 32>}, {transform_indices = @transform_1, window_bounds = array<i64: 2, 256>}, {transform_indices = @transform_2, window_bounds = array<i64: 1, 256>}]} {
    %c0 = arith.constant 0 : index
    %c0_0 = arith.constant 0 : index
    %0 = vector.load %arg2[%c0, %c0_0] : memref<2x256xf32, #tpu.memory_space<vmem>>, vector<2x256xf32>
    %c0_1 = arith.constant 0 : index
    %c0_2 = arith.constant 0 : index
    %c0_3 = arith.constant 0 : index
    %1 = vector.load %arg1[%c0_1, %c0_2, %c0_3] : memref<5x32x32xf32, #tpu.memory_space<vmem>>, vector<1x32x1xf32>
    %2 = vector.shape_cast %1 : vector<1x32x1xf32> to vector<32x1xf32>
    %3 = vector.extract_strided_slice %0 {offsets = [0, 0], sizes = [1, 256], strides = [1, 1]} : vector<2x256xf32> to vector<1x256xf32>
    %4 = vector.broadcast %2 : vector<32x1xf32> to vector<32x256xf32>
    %5 = vector.broadcast %3 : vector<1x256xf32> to vector<32x256xf32>
    %6 = arith.mulf %4, %5 : vector<32x256xf32>
    %c0_4 = arith.constant 0 : index
    %c0_5 = arith.constant 0 : index
    %c1 = arith.constant 1 : index
    %7 = vector.load %arg1[%c0_4, %c0_5, %c1] : memref<5x32x32xf32, #tpu.memory_space<vmem>>, vector<1x32x1xf32>
    %8 = vector.shape_cast %7 : vector<1x32x1xf32> to vector<32x1xf32>
    %9 = vector.extract_strided_slice %0 {offsets = [1, 0], sizes = [1, 256], strides = [1, 1]} : vector<2x256xf32> to vector<1x256xf32>
    %10 = vector.broadcast %8 : vector<32x1xf32> to vector<32x256xf32>
    %11 = vector.broadcast %9 : vector<1x256xf32> to vector<32x256xf32>
    %12 = arith.mulf %10, %11 : vector<32x256xf32>
    %13 = arith.addf %6, %12 : vector<32x256xf32>
    %c4 = arith.constant 4 : index
    %c0_6 = arith.constant 0 : index
    %c0_7 = arith.constant 0 : index
    %14 = vector.load %arg1[%c4, %c0_6, %c0_7] : memref<5x32x32xf32, #tpu.memory_space<vmem>>, vector<1x32x1xf32>
    %15 = vector.shape_cast %14 : vector<1x32x1xf32> to vector<32x1xf32>
    %16 = vector.broadcast %15 : vector<32x1xf32> to vector<32x256xf32>
    %17 = arith.addf %13, %16 : vector<32x256xf32>
    %18 = math.tanh %17 : vector<32x256xf32>
    %c1_8 = arith.constant 1 : index
    %c0_9 = arith.constant 0 : index
    %c0_10 = arith.constant 0 : index
    %19 = vector.load %arg1[%c1_8, %c0_9, %c0_10] : memref<5x32x32xf32, #tpu.memory_space<vmem>>, vector<1x32x32xf32>
    %20 = vector.shape_cast %19 : vector<1x32x32xf32> to vector<32x32xf32>
    %cst = arith.constant dense<0.000000e+00> : vector<32x256xf32>
    %21 = tpu.matmul %20, %18, %cst {dimension_numbers = #tpu.dot_dimension_numbers<[1], [0], [0], [1], [0, 0, 1, 1], [], []>, precision = #tpu.contract_precision<fp32>} : vector<32x32xf32>, vector<32x256xf32>, vector<32x256xf32> -> vector<32x256xf32>
    %c4_11 = arith.constant 4 : index
    %c0_12 = arith.constant 0 : index
    %c1_13 = arith.constant 1 : index
    %22 = vector.load %arg1[%c4_11, %c0_12, %c1_13] : memref<5x32x32xf32, #tpu.memory_space<vmem>>, vector<1x32x1xf32>
    %23 = vector.shape_cast %22 : vector<1x32x1xf32> to vector<32x1xf32>
    %24 = vector.broadcast %23 : vector<32x1xf32> to vector<32x256xf32>
    %25 = arith.addf %21, %24 : vector<32x256xf32>
    %26 = math.tanh %25 : vector<32x256xf32>
    %c2 = arith.constant 2 : index
    %c0_14 = arith.constant 0 : index
    %c0_15 = arith.constant 0 : index
    %27 = vector.load %arg1[%c2, %c0_14, %c0_15] : memref<5x32x32xf32, #tpu.memory_space<vmem>>, vector<1x32x32xf32>
    %28 = vector.shape_cast %27 : vector<1x32x32xf32> to vector<32x32xf32>
    %cst_16 = arith.constant dense<0.000000e+00> : vector<32x256xf32>
    %29 = tpu.matmul %28, %26, %cst_16 {dimension_numbers = #tpu.dot_dimension_numbers<[1], [0], [0], [1], [0, 0, 1, 1], [], []>, precision = #tpu.contract_precision<fp32>} : vector<32x32xf32>, vector<32x256xf32>, vector<32x256xf32> -> vector<32x256xf32>
    %c4_17 = arith.constant 4 : index
    %c0_18 = arith.constant 0 : index
    %c2_19 = arith.constant 2 : index
    %30 = vector.load %arg1[%c4_17, %c0_18, %c2_19] : memref<5x32x32xf32, #tpu.memory_space<vmem>>, vector<1x32x1xf32>
    %31 = vector.shape_cast %30 : vector<1x32x1xf32> to vector<32x1xf32>
    %32 = vector.broadcast %31 : vector<32x1xf32> to vector<32x256xf32>
    %33 = arith.addf %29, %32 : vector<32x256xf32>
    %34 = math.tanh %33 : vector<32x256xf32>
    %c3 = arith.constant 3 : index
    %c0_20 = arith.constant 0 : index
    %c0_21 = arith.constant 0 : index
    %35 = vector.load %arg1[%c3, %c0_20, %c0_21] : memref<5x32x32xf32, #tpu.memory_space<vmem>>, vector<1x32x1xf32>
    %36 = vector.shape_cast %35 : vector<1x32x1xf32> to vector<32x1xf32>
    %37 = vector.broadcast %36 : vector<32x1xf32> to vector<32x256xf32>
    %38 = arith.mulf %37, %34 : vector<32x256xf32>
    %cst_22 = arith.constant dense<0.000000e+00> : vector<256xf32>
    %39 = vector.multi_reduction <add>, %38, %cst_22 [0] : vector<32x256xf32> to vector<256xf32>
    %40 = vector.shape_cast %39 : vector<256xf32> to vector<1x256xf32>
    %c4_23 = arith.constant 4 : index
    %c0_24 = arith.constant 0 : index
    %c3_25 = arith.constant 3 : index
    %41 = vector.load %arg1[%c4_23, %c0_24, %c3_25] : memref<5x32x32xf32, #tpu.memory_space<vmem>>, vector<1x1x1xf32>
    %42 = vector.shape_cast %41 : vector<1x1x1xf32> to vector<1x1xf32>
    %43 = vector.broadcast %42 : vector<1x1xf32> to vector<1x256xf32>
    %44 = arith.addf %40, %43 : vector<1x256xf32>
    %c0_26 = arith.constant 0 : index
    %c0_27 = arith.constant 0 : index
    %45 = vector.load %arg3[%c0_26, %c0_27] : memref<1x256xf32, #tpu.memory_space<vmem>>, vector<1x256xf32>
    tpu.vector_store %arg3[%c0_26, %c0_27], %44 {strides = array<i32>} : memref<1x256xf32, #tpu.memory_space<vmem>>, vector<1x256xf32>,
    return
  }
  func.func @transform_0(%arg0: i32) -> (i32, i32, i32) {
    %c0_i32 = arith.constant 0 : i32
    %c0_i32_0 = arith.constant 0 : i32
    %c0_i32_1 = arith.constant 0 : i32
    %c0_i32_2 = arith.constant 0 : i32
    return %c0_i32, %c0_i32_0, %c0_i32_1 : i32, i32, i32
  }
  func.func @transform_1(%arg0: i32) -> (i32, i32) {
    %c0_i32 = arith.constant 0 : i32
    %c0_i32_0 = arith.constant 0 : i32
    return %c0_i32, %arg0 : i32, i32
  }
  func.func @transform_2(%arg0: i32) -> (i32, i32) {
    %c0_i32 = arith.constant 0 : i32
    %c0_i32_0 = arith.constant 0 : i32
    return %c0_i32, %arg0 : i32, i32
  }
}

</mosaic_0001>

<llo_original>
// kernel: tpu_custom_call.1
$region0: #{tpu_custom_call.1}
  #allocation0 [shape = 'u32[]', space=smem, size = 0x4, offset = 0x4, fixed_abs, tag = 'smem constant byte address 0x4 - core index']
  #allocation1 [shape = 'u32[144,128]{1,0:T(1,128)}', space=vmem, size = 0x12000, scoped, tag = 'internal scratch']
  %s0 = inlined_call_operand.hbm [shape: f32[5,32,32], index: 0, kind: input, shape index: {}]
  %s1 = inlined_call_operand.hbm [shape: f32[2,256], index: 1, kind: input, shape index: {}]
  %s2 = inlined_call_operand.hbm [shape: f32[1,256], index: 2, kind: output, shape index: {}]
  %s3 = sld [smem:[#allocation0]]
  $region26: #{tpu_custom_call.1} parent=0
    _
  %s5 = ssub.s32 1, %s3
  %s6 = scalar_select 0, %s5, %s3
  $region1: #{tpu_custom_call.1} parent=0
    #allocation2 [shape = 'u8[81920]{0}', space=vmem, size = 0x14000, scoped, tag = 'input window, operand 0, single buffered']
    #allocation3 [shape = 's32[1]{0}', space=sflag, size = 0x4, scoped, tag = 'scoped memory for tpu_custom_call.1']
    #allocation4 [shape = 's32[1]{0}', space=sflag, size = 0x4, scoped, tag = 'scoped memory for tpu_custom_call.1']
    #allocation5 [shape = 'u8[2048]{0}', space=vmem, size = 0x800, scoped, tag = 'input window, operand 1, single buffered']
    #allocation6 [shape = 's32[1]{0}', space=sflag, size = 0x4, scoped, tag = 'scoped memory for tpu_custom_call.1']
    #allocation7 [shape = 'u8[1024]{0}', space=vmem, size = 0x400, scoped, tag = 'output window, operand 0, single buffered']
    %7 = vsyncpa [#allocation3], 0
    %8 = vsyncpa [#allocation6], 0
    %9 = vsyncpa [#allocation4], 0
    // Predicated region
    $region2: #{tpu_custom_call.1} parent=1 // pred_check
      _
    $region3: #{tpu_custom_call.1} parent=1 // pred_check_branch
      %11 = sbr.rel (0) target = $region5
    $region4: #{tpu_custom_call.1} parent=1 // pred_region
      %s13 = ssub.s32 2560, 2560
      %14 = vsyncadd [#allocation3], %s13
      %s15 = sshll.u32 [#allocation2], 4
      %s16 = int_to_ptr.vmem [resolvable:$true] %s15
      %21 = dma.hbm_to_vmem [thread:$0]  %s0, 2560, %s16, [#allocation3], 128, 128, 8
    $region5: #{tpu_custom_call.1} parent=1 // pred_fallthru
      _
    // Predicated region
    $region6: #{tpu_custom_call.1} parent=1 // pred_check
      _
    $region7: #{tpu_custom_call.1} parent=1 // pred_check_branch
      %23 = sbr.rel (0) target = $region9
    $region8: #{tpu_custom_call.1} parent=1 // pred_region
      %s25 = ssub.s32 64, 64
      %26 = vsyncadd [#allocation6], %s25
      %s28 = sshll.u32 [#allocation5], 4
      %s29 = int_to_ptr.vmem [resolvable:$true] %s28
      %31 = dma.hbm_to_vmem [thread:$0]  %s1, 64, %s29, [#allocation6]
    $region9: #{tpu_custom_call.1} parent=1 // pred_fallthru
      _
    // Predicated region
    $region10: #{tpu_custom_call.1} parent=1 // pred_check
      _
    $region11: #{tpu_custom_call.1} parent=1 // pred_check_branch
      %33 = sbr.rel (0) target = $region13
    $region12: #{tpu_custom_call.1} parent=1 // pred_region
      %34 = dma.done [#allocation3], 2560
    $region13: #{tpu_custom_call.1} parent=1 // pred_fallthru
      _
    // Predicated region
    $region14: #{tpu_custom_call.1} parent=1 // pred_check
      _
    $region15: #{tpu_custom_call.1} parent=1 // pred_check_branch
      %36 = sbr.rel (0) target = $region17
    $region16: #{tpu_custom_call.1} parent=1 // pred_region
      %37 = dma.done [#allocation6], 64
    $region17: #{tpu_custom_call.1} parent=1 // pred_fallthru
      _
    %v38 = vld [vmem:[#allocation5] sm:$0xf]
    %v39 = vld [vmem:[#allocation2] sm:$0xff]
    %v40 = vld [vmem:[#allocation2 + $0x8] sm:$0xff]
    %v41 = vld [vmem:[#allocation2 + $0x10] sm:$0xff]
    %v42 = vld [vmem:[#allocation2 + $0x18] sm:$0xff]
    %44 = vset.pattern.permute.xlu0 0
    %45 = vperm.xlu0 %44, %v39
    %v46 = vpop.permute.xlu0 %45
    %49 = vset.pattern.permute.xlu0 0
    %50 = vperm.xlu0 %49, %v40
    %v51 = vpop.permute.xlu0 %50
    %54 = vset.pattern.permute.xlu0 0
    %55 = vperm.xlu0 %54, %v41
    %v56 = vpop.permute.xlu0 %55
    %59 = vset.pattern.permute.xlu0 0
    %60 = vperm.xlu0 %59, %v42
    %v61 = vpop.permute.xlu0 %60
    %v64 = vlaneseq
    %v65 = vshrl.u32 %v64, 7
    %v66 = vsub.s32 0, %v65
    %v67 = vrot.slane %v38, %v66
    %v68 = vlaneseq
    %v69 = vshrl.u32 %v68, 7
    %v70 = vsub.s32 2, %v69
    %v71 = vrot.slane %v38, %v70
    %v74 = vlaneseq
    %v75 = vshrl.u32 %v74, 7
    %v76 = vsub.s32 0, %v75
    %v77 = vrot.slane %v67, %v76
    %v78 = vlaneseq
    %v79 = vshrl.u32 %v78, 7
    %v80 = vsub.s32 0, %v79
    %v81 = vrot.slane %v71, %v80
    %v82 = vmul.f32 %v46, %v77
    %v83 = vmul.f32 %v46, %v81
    %v84 = vmul.f32 %v51, %v77
    %v85 = vmul.f32 %v51, %v81
    %v86 = vmul.f32 %v56, %v77
    %v87 = vmul.f32 %v56, %v81
    %v88 = vmul.f32 %v61, %v77
    %v89 = vmul.f32 %v61, %v81
    %90 = vset.pattern.permute.xlu0 1
    %91 = vperm.xlu0 %90, %v39
    %v92 = vpop.permute.xlu0 %91
    %94 = vset.pattern.permute.xlu0 1
    %95 = vperm.xlu0 %94, %v40
    %v96 = vpop.permute.xlu0 %95
    %98 = vset.pattern.permute.xlu0 1
    %99 = vperm.xlu0 %98, %v41
    %v100 = vpop.permute.xlu0 %99
    %102 = vset.pattern.permute.xlu0 1
    %103 = vperm.xlu0 %102, %v42
    %v104 = vpop.permute.xlu0 %103
    %v106 = vlaneseq
    %v107 = vshrl.u32 %v106, 7
    %v108 = vsub.s32 1, %v107
    %v109 = vrot.slane %v38, %v108
    %v110 = vlaneseq
    %v111 = vshrl.u32 %v110, 7
    %v112 = vsub.s32 3, %v111
    %v113 = vrot.slane %v38, %v112
    %v116 = vlaneseq
    %v117 = vshrl.u32 %v116, 7
    %v118 = vsub.s32 1, %v117
    %v119 = vrot.slane %v109, %v118
    %v120 = vlaneseq
    %v121 = vshrl.u32 %v120, 7
    %v122 = vsub.s32 1, %v121
    %v123 = vrot.slane %v113, %v122
    %v124 = vmul.f32 %v92, %v119
    %v125 = vmul.f32 %v92, %v123
    %v126 = vmul.f32 %v96, %v119
    %v127 = vmul.f32 %v96, %v123
    %v128 = vmul.f32 %v100, %v119
    %v129 = vmul.f32 %v100, %v123
    %v130 = vmul.f32 %v104, %v119
    %v131 = vmul.f32 %v104, %v123
    %v132 = vadd.f32 %v82, %v124
    %v133 = vadd.f32 %v83, %v125
    %v134 = vadd.f32 %v84, %v126
    %v135 = vadd.f32 %v85, %v127
    %v136 = vadd.f32 %v86, %v128
    %v137 = vadd.f32 %v87, %v129
    %v138 = vadd.f32 %v88, %v130
    %v139 = vadd.f32 %v89, %v131
    %s140 = scalar_lea.vmem [#allocation2], 128
    %v141 = vld [vmem:[%s140] sm:$0xff]
    %v142 = vld [vmem:[%s140 + $0x8] sm:$0xff]
    %v143 = vld [vmem:[%s140 + $0x10] sm:$0xff]
    %v144 = vld [vmem:[%s140 + $0x18] sm:$0xff]
    %146 = vset.pattern.permute.xlu0 0
    %147 = vperm.xlu0 %146, %v141
    %v148 = vpop.permute.xlu0 %147
    %151 = vset.pattern.permute.xlu0 0
    %152 = vperm.xlu0 %151, %v142
    %v153 = vpop.permute.xlu0 %152
    %156 = vset.pattern.permute.xlu0 0
    %157 = vperm.xlu0 %156, %v143
    %v158 = vpop.permute.xlu0 %157
    %161 = vset.pattern.permute.xlu0 0
    %162 = vperm.xlu0 %161, %v144
    %v163 = vpop.permute.xlu0 %162
    %v165 = vadd.f32 %v132, %v148
    %v166 = vadd.f32 %v133, %v148
    %v167 = vadd.f32 %v134, %v153
    %v168 = vadd.f32 %v135, %v153
    %v169 = vadd.f32 %v136, %v158
    %v170 = vadd.f32 %v137, %v158
    %v171 = vadd.f32 %v138, %v163
    %v172 = vadd.f32 %v139, %v163
    %v173 = vtanh.pop %v165
    %v174 = vtanh.pop %v166
    %v175 = vtanh.pop %v167
    %v176 = vtanh.pop %v168
    %v177 = vtanh.pop %v169
    %v178 = vtanh.pop %v170
    %v179 = vtanh.pop %v171
    %v180 = vtanh.pop %v172
    %s181 = scalar_lea.vmem [#allocation2], 32
    %v182 = vld [vmem:[%s181] sm:$0xff]
    %v183 = vld [vmem:[%s181 + $0x8] sm:$0xff]
    %v184 = vld [vmem:[%s181 + $0x10] sm:$0xff]
    %v185 = vld [vmem:[%s181 + $0x18] sm:$0xff]
    %186 = vset.pattern.permute.xlu0 1
    %187 = vperm.xlu0 %186, %v141
    %v188 = vpop.permute.xlu0 %187
    %190 = vset.pattern.permute.xlu0 1
    %191 = vperm.xlu0 %190, %v142
    %v192 = vpop.permute.xlu0 %191
    %194 = vset.pattern.permute.xlu0 1
    %195 = vperm.xlu0 %194, %v143
    %v196 = vpop.permute.xlu0 %195
    %198 = vset.pattern.permute.xlu0 1
    %199 = vperm.xlu0 %198, %v144
    %v200 = vpop.permute.xlu0 %199
    %vm202 = vcmask 261120
    %v204 = vsel %vm202, %v182, 0
    %v207 = vsel %vm202, %v183, 0
    %v210 = vsel %vm202, %v184, 0
    %v213 = vsel %vm202, %v185, 0
    %v215 = vand.u32 %v174, 4294901760
    %216 = vmatprep.subr.mxu0 %v215
    %v217 = vand.u32 %v173, 4294901760
    %218 = vmatpush1.msra.mxu0 %v217
    %v219 = vand.u32 %v176, 4294901760
    %220 = vmatprep.subr.mxu0 %v219
    %v221 = vand.u32 %v175, 4294901760
    %222 = vmatpush1.msra.mxu0 %v221
    %v223 = vand.u32 %v178, 4294901760
    %224 = vmatprep.subr.mxu0 %v223
    %v225 = vand.u32 %v177, 4294901760
    %226 = vmatpush1.msra.mxu0 %v225
    %v227 = vand.u32 %v180, 4294901760
    %228 = vmatprep.subr.mxu0 %v227
    %v229 = vand.u32 %v179, 4294901760
    %230 = vmatpush1.msra.mxu0 %v229
    %231 = vmatprep.subr.mxu0 0.0
    %232 = vmatpush1.msra.mxu0 0.0
    %233 = vmatprep.subr.mxu0 0.0
    %234 = vmatpush1.msra.mxu0 0.0
    %235 = vmatprep.subr.mxu0 0.0
    %236 = vmatpush1.msra.mxu0 0.0
    %237 = vmatprep.subr.mxu0 0.0
    %238 = vmatpush1.msra.mxu0 0.0
    %239 = vmatprep.subr.mxu0 0.0
    %240 = vmatpush1.msra.mxu0 0.0
    %241 = vmatprep.subr.mxu0 0.0
    %242 = vmatpush1.msra.mxu0 0.0
    %243 = vmatprep.subr.mxu0 0.0
    %244 = vmatpush1.msra.mxu0 0.0
    %245 = vmatprep.subr.mxu0 0.0
    %246 = vmatpush1.msra.mxu0 0.0
    %247 = vmatprep.subr.mxu0 0.0
    %248 = vmatpush1.msra.mxu0 0.0
    %249 = vmatprep.subr.mxu0 0.0
    %250 = vmatpush1.msra.mxu0 0.0
    %251 = vmatprep.subr.mxu0 0.0
    %252 = vmatpush1.msra.mxu0 0.0
    %253 = vmatprep.subr.mxu0 0.0
    %254 = vmatpush1.msra.mxu0 0.0
    %255 = vmatprep.subr.mxu0 0.0
    %256 = vmatpush1.msra.mxu0 0.0
    %257 = vmatprep.subr.mxu0 0.0
    %258 = vmatpush1.msra.mxu0 0.0
    %259 = vmatprep.subr.mxu0 0.0
    %260 = vmatpush1.msra.mxu0 0.0
    %261 = vmatprep.subr.mxu0 0.0
    %262 = vmatpush1.msra.mxu0 0.0
    %263 = vmatprep.subr.mxu0 0.0
    %264 = vmatpush1.msra.mxu0 0.0
    %265 = vmatprep.subr.mxu0 0.0
    %266 = vmatpush1.msra.mxu0 0.0
    %267 = vmatprep.subr.mxu0 0.0
    %268 = vmatpush1.msra.mxu0 0.0
    %269 = vmatprep.subr.mxu0 0.0
    %270 = vmatpush1.msra.mxu0 0.0
    %271 = vmatprep.subr.mxu0 0.0
    %272 = vmatpush1.msra.mxu0 0.0
    %273 = vmatprep.subr.mxu0 0.0
    %274 = vmatpush1.msra.mxu0 0.0
    %275 = vmatprep.subr.mxu0 0.0
    %276 = vmatpush1.msra.mxu0 0.0
    %277 = vmatprep.subr.mxu0 0.0
    %278 = vmatpush1.msra.mxu0 0.0
    %279 = vmatprep.subr.mxu0 0.0
    %280 = vmatpush1.msra.mxu0 0.0
    %281 = vmatprep.subr.mxu0 0.0
    %282 = vmatpush1.msra.mxu0 0.0
    %283 = vmatprep.subr.mxu0 0.0
    %284 = vmatpush1.msra.mxu0 0.0
    %285 = vmatprep.subr.mxu0 0.0
    %286 = vmatpush1.msra.mxu0 0.0
    %287 = vmatprep.mubr.f32.mxu0 0.0
    %v288 = vand.u32 %v204, 4294901760
    %v289 = vsub.f32 %v204, %v288
    %v290 = vand.u32 %v289, 4294901760
    %v291 = vsub.f32 %v289, %v290
    %v292 = vand.u32 %v291, 4294901760
    %293 = vmatmul.mubr.f32.gmra.mrb[0].mxu0 %v292
    %v294 = vpop.f32.mrb[0].mxu0
    %v295 = vadd.f32 %v188, %v294
    %v296 = vpop.f32.mrb[0].mxu0
    %v297 = vadd.f32 %v188, %v296
    %298 = vmatprep.mubr.f32.mxu0 0.0
    %v299 = vand.u32 %v207, 4294901760
    %v300 = vsub.f32 %v207, %v299
    %v301 = vand.u32 %v300, 4294901760
    %v302 = vsub.f32 %v300, %v301
    %v303 = vand.u32 %v302, 4294901760
    %304 = vmatmul.mubr.f32.gmra.mrb[0].mxu0 %v303
    %v305 = vpop.f32.mrb[0].mxu0
    %v306 = vadd.f32 %v192, %v305
    %v307 = vpop.f32.mrb[0].mxu0
    %v308 = vadd.f32 %v192, %v307
    %309 = vmatprep.mubr.f32.mxu0 0.0
    %v310 = vand.u32 %v210, 4294901760
    %v311 = vsub.f32 %v210, %v310
    %v312 = vand.u32 %v311, 4294901760
    %v313 = vsub.f32 %v311, %v312
    %v314 = vand.u32 %v313, 4294901760
    %315 = vmatmul.mubr.f32.gmra.mrb[0].mxu0 %v314
    %v316 = vpop.f32.mrb[0].mxu0
    %v317 = vadd.f32 %v196, %v316
    %v318 = vpop.f32.mrb[0].mxu0
    %v319 = vadd.f32 %v196, %v318
    %320 = vmatprep.mubr.f32.mxu0 0.0
    %v321 = vand.u32 %v213, 4294901760
    %v322 = vsub.f32 %v213, %v321
    %v323 = vand.u32 %v322, 4294901760
    %v324 = vsub.f32 %v322, %v323
    %v325 = vand.u32 %v324, 4294901760
    %326 = vmatmul.mubr.f32.gmra.mrb[0].mxu0 %v325
    %v327 = vpop.f32.mrb[0].mxu0
    %v328 = vadd.f32 %v200, %v327
    %v329 = vpop.f32.mrb[0].mxu0
    %v330 = vadd.f32 %v200, %v329
    %331 = vdwg.mxu0
    %v332 = vand.u32 %v174, 4294901760
    %v333 = vsub.f32 %v174, %v332
    %v334 = vand.u32 %v333, 4294901760
    %v335 = vsub.f32 %v333, %v334
    %v336 = vand.u32 %v335, 4294901760
    %337 = vmatprep.subr.mxu0 %v336
    %v338 = vand.u32 %v173, 4294901760
    %v339 = vsub.f32 %v173, %v338
    %v340 = vand.u32 %v339, 4294901760
    %v341 = vsub.f32 %v339, %v340
    %v342 = vand.u32 %v341, 4294901760
    %343 = vmatpush1.msra.mxu0 %v342
    %v344 = vand.u32 %v176, 4294901760
    %v345 = vsub.f32 %v176, %v344
    %v346 = vand.u32 %v345, 4294901760
    %v347 = vsub.f32 %v345, %v346
    %v348 = vand.u32 %v347, 4294901760
    %349 = vmatprep.subr.mxu0 %v348
    %v350 = vand.u32 %v175, 4294901760
    %v351 = vsub.f32 %v175, %v350
    %v352 = vand.u32 %v351, 4294901760
    %v353 = vsub.f32 %v351, %v352
    %v354 = vand.u32 %v353, 4294901760
    %355 = vmatpush1.msra.mxu0 %v354
    %v356 = vand.u32 %v178, 4294901760
    %v357 = vsub.f32 %v178, %v356
    %v358 = vand.u32 %v357, 4294901760
    %v359 = vsub.f32 %v357, %v358
    %v360 = vand.u32 %v359, 4294901760
    %361 = vmatprep.subr.mxu0 %v360
    %v362 = vand.u32 %v177, 4294901760
    %v363 = vsub.f32 %v177, %v362
    %v364 = vand.u32 %v363, 4294901760
    %v365 = vsub.f32 %v363, %v364
    %v366 = vand.u32 %v365, 4294901760
    %367 = vmatpush1.msra.mxu0 %v366
    %v368 = vand.u32 %v180, 4294901760
    %v369 = vsub.f32 %v180, %v368
    %v370 = vand.u32 %v369, 4294901760
    %v371 = vsub.f32 %v369, %v370
    %v372 = vand.u32 %v371, 4294901760
    %373 = vmatprep.subr.mxu0 %v372
    %v374 = vand.u32 %v179, 4294901760
    %v375 = vsub.f32 %v179, %v374
    %v376 = vand.u32 %v375, 4294901760
    %v377 = vsub.f32 %v375, %v376
    %v378 = vand.u32 %v377, 4294901760
    %379 = vmatpush1.msra.mxu0 %v378
    %380 = vmatprep.subr.mxu0 0.0
    %381 = vmatpush1.msra.mxu0 0.0
    %382 = vmatprep.subr.mxu0 0.0
    %383 = vmatpush1.msra.mxu0 0.0
    %384 = vmatprep.subr.mxu0 0.0
    %385 = vmatpush1.msra.mxu0 0.0
    %386 = vmatprep.subr.mxu0 0.0
    %387 = vmatpush1.msra.mxu0 0.0
    %388 = vmatprep.subr.mxu0 0.0
    %389 = vmatpush1.msra.mxu0 0.0
    %390 = vmatprep.subr.mxu0 0.0
    %391 = vmatpush1.msra.mxu0 0.0
    %392 = vmatprep.subr.mxu0 0.0
    %393 = vmatpush1.msra.mxu0 0.0
    %394 = vmatprep.subr.mxu0 0.0
    %395 = vmatpush1.msra.mxu0 0.0
    %396 = vmatprep.subr.mxu0 0.0
    %397 = vmatpush1.msra.mxu0 0.0
    %398 = vmatprep.subr.mxu0 0.0
    %399 = vmatpush1.msra.mxu0 0.0
    %400 = vmatprep.subr.mxu0 0.0
    %401 = vmatpush1.msra.mxu0 0.0
    %402 = vmatprep.subr.mxu0 0.0
    %403 = vmatpush1.msra.mxu0 0.0
    %404 = vmatprep.subr.mxu0 0.0
    %405 = vmatpush1.msra.mxu0 0.0
    %406 = vmatprep.subr.mxu0 0.0
    %407 = vmatpush1.msra.mxu0 0.0
    %408 = vmatprep.subr.mxu0 0.0
    %409 = vmatpush1.msra.mxu0 0.0
    %410 = vmatprep.subr.mxu0 0.0
    %411 = vmatpush1.msra.mxu0 0.0
    %412 = vmatprep.subr.mxu0 0.0
    %413 = vmatpush1.msra.mxu0 0.0
    %414 = vmatprep.subr.mxu0 0.0
    %415 = vmatpush1.msra.mxu0 0.0
    %416 = vmatprep.subr.mxu0 0.0
    %417 = vmatpush1.msra.mxu0 0.0
    %418 = vmatprep.subr.mxu0 0.0
    %419 = vmatpush1.msra.mxu0 0.0
    %420 = vmatprep.subr.mxu0 0.0
    %421 = vmatpush1.msra.mxu0 0.0
    %422 = vmatprep.subr.mxu0 0.0
    %423 = vmatpush1.msra.mxu0 0.0
    %424 = vmatprep.subr.mxu0 0.0
    %425 = vmatpush1.msra.mxu0 0.0
    %426 = vmatprep.subr.mxu0 0.0
    %427 = vmatpush1.msra.mxu0 0.0
    %428 = vmatprep.subr.mxu0 0.0
    %429 = vmatpush1.msra.mxu0 0.0
    %430 = vmatprep.subr.mxu0 0.0
    %431 = vmatpush1.msra.mxu0 0.0
    %432 = vmatprep.subr.mxu0 0.0
    %433 = vmatpush1.msra.mxu0 0.0
    %434 = vmatprep.subr.mxu0 0.0
    %435 = vmatpush1.msra.mxu0 0.0
    %436 = vmatprep.mubr.f32.mxu0 0.0
    %v437 = vand.u32 %v204, 4294901760
    %438 = vmatmul.mubr.f32.gmra.mrb[0].mxu0 %v437
    %v439 = vpop.f32.mrb[0].mxu0
    %v440 = vadd.f32 %v295, %v439
    %v441 = vpop.f32.mrb[0].mxu0
    %v442 = vadd.f32 %v297, %v441
    %443 = vmatprep.mubr.f32.mxu0 0.0
    %v444 = vand.u32 %v207, 4294901760
    %445 = vmatmul.mubr.f32.gmra.mrb[0].mxu0 %v444
    %v446 = vpop.f32.mrb[0].mxu0
    %v447 = vadd.f32 %v306, %v446
    %v448 = vpop.f32.mrb[0].mxu0
    %v449 = vadd.f32 %v308, %v448
    %450 = vmatprep.mubr.f32.mxu0 0.0
    %v451 = vand.u32 %v210, 4294901760
    %452 = vmatmul.mubr.f32.gmra.mrb[0].mxu0 %v451
    %v453 = vpop.f32.mrb[0].mxu0
    %v454 = vadd.f32 %v317, %v453
    %v455 = vpop.f32.mrb[0].mxu0
    %v456 = vadd.f32 %v319, %v455
    %457 = vmatprep.mubr.f32.mxu0 0.0
    %v458 = vand.u32 %v213, 4294901760
    %459 = vmatmul.mubr.f32.gmra.mrb[0].mxu0 %v458
    %v460 = vpop.f32.mrb[0].mxu0
    %v461 = vadd.f32 %v328, %v460
    %v462 = vpop.f32.mrb[0].mxu0
    %v463 = vadd.f32 %v330, %v462
    %464 = vdwg.mxu0
    %v465 = vand.u32 %v174, 4294901760
    %v466 = vsub.f32 %v174, %v465
    %467 = vmatprep.subr.mxu0 %v466
    %v468 = vand.u32 %v173, 4294901760
    %v469 = vsub.f32 %v173, %v468
    %470 = vmatpush1.msra.mxu0 %v469
    %v471 = vand.u32 %v176, 4294901760
    %v472 = vsub.f32 %v176, %v471
    %473 = vmatprep.subr.mxu0 %v472
    %v474 = vand.u32 %v175, 4294901760
    %v475 = vsub.f32 %v175, %v474
    %476 = vmatpush1.msra.mxu0 %v475
    %v477 = vand.u32 %v178, 4294901760
    %v478 = vsub.f32 %v178, %v477
    %479 = vmatprep.subr.mxu0 %v478
    %v480 = vand.u32 %v177, 4294901760
    %v481 = vsub.f32 %v177, %v480
    %482 = vmatpush1.msra.mxu0 %v481
    %v483 = vand.u32 %v180, 4294901760
    %v484 = vsub.f32 %v180, %v483
    %485 = vmatprep.subr.mxu0 %v484
    %v486 = vand.u32 %v179, 4294901760
    %v487 = vsub.f32 %v179, %v486
    %488 = vmatpush1.msra.mxu0 %v487
    %489 = vmatprep.subr.mxu0 0.0
    %490 = vmatpush1.msra.mxu0 0.0
    %491 = vmatprep.subr.mxu0 0.0
    %492 = vmatpush1.msra.mxu0 0.0
    %493 = vmatprep.subr.mxu0 0.0
    %494 = vmatpush1.msra.mxu0 0.0
    %495 = vmatprep.subr.mxu0 0.0
    %496 = vmatpush1.msra.mxu0 0.0
    %497 = vmatprep.subr.mxu0 0.0
    %498 = vmatpush1.msra.mxu0 0.0
    %499 = vmatprep.subr.mxu0 0.0
    %500 = vmatpush1.msra.mxu0 0.0
    %501 = vmatprep.subr.mxu0 0.0
    %502 = vmatpush1.msra.mxu0 0.0
    %503 = vmatprep.subr.mxu0 0.0
    %504 = vmatpush1.msra.mxu0 0.0
    %505 = vmatprep.subr.mxu0 0.0
    %506 = vmatpush1.msra.mxu0 0.0
    %507 = vmatprep.subr.mxu0 0.0
    %508 = vmatpush1.msra.mxu0 0.0
    %509 = vmatprep.subr.mxu0 0.0
    %510 = vmatpush1.msra.mxu0 0.0
    %511 = vmatprep.subr.mxu0 0.0
    %512 = vmatpush1.msra.mxu0 0.0
    %513 = vmatprep.subr.mxu0 0.0
    %514 = vmatpush1.msra.mxu0 0.0
    %515 = vmatprep.subr.mxu0 0.0
    %516 = vmatpush1.msra.mxu0 0.0
    %517 = vmatprep.subr.mxu0 0.0
    %518 = vmatpush1.msra.mxu0 0.0
    %519 = vmatprep.subr.mxu0 0.0
    %520 = vmatpush1.msra.mxu0 0.0
    %521 = vmatprep.subr.mxu0 0.0
    %522 = vmatpush1.msra.mxu0 0.0
    %523 = vmatprep.subr.mxu0 0.0
    %524 = vmatpush1.msra.mxu0 0.0
    %525 = vmatprep.subr.mxu0 0.0
    %526 = vmatpush1.msra.mxu0 0.0
    %527 = vmatprep.subr.mxu0 0.0
    %528 = vmatpush1.msra.mxu0 0.0
    %529 = vmatprep.subr.mxu0 0.0
    %530 = vmatpush1.msra.mxu0 0.0
    %531 = vmatprep.subr.mxu0 0.0
    %532 = vmatpush1.msra.mxu0 0.0
    %533 = vmatprep.subr.mxu0 0.0
    %534 = vmatpush1.msra.mxu0 0.0
    %535 = vmatprep.subr.mxu0 0.0
    %536 = vmatpush1.msra.mxu0 0.0
    %537 = vmatprep.subr.mxu0 0.0
    %538 = vmatpush1.msra.mxu0 0.0
    %539 = vmatprep.subr.mxu0 0.0
    %540 = vmatpush1.msra.mxu0 0.0
    %541 = vmatprep.subr.mxu0 0.0
    %542 = vmatpush1.msra.mxu0 0.0
    %543 = vmatprep.subr.mxu0 0.0
    %544 = vmatpush1.msra.mxu0 0.0
    %545 = vmatprep.mubr.f32.mxu0 0.0
    %v546 = vand.u32 %v204, 4294901760
    %v547 = vsub.f32 %v204, %v546
    %548 = vmatmul.mubr.f32.gmra.mrb[0].mxu0 %v547
    %v549 = vpop.f32.mrb[0].mxu0
    %v550 = vadd.f32 %v440, %v549
    %v551 = vpop.f32.mrb[0].mxu0
    %v552 = vadd.f32 %v442, %v551
    %553 = vmatprep.mubr.f32.mxu0 0.0
    %v554 = vand.u32 %v207, 4294901760
    %v555 = vsub.f32 %v207, %v554
    %556 = vmatmul.mubr.f32.gmra.mrb[0].mxu0 %v555
    %v557 = vpop.f32.mrb[0].mxu0
    %v558 = vadd.f32 %v447, %v557
    %v559 = vpop.f32.mrb[0].mxu0
    %v560 = vadd.f32 %v449, %v559
    %561 = vmatprep.mubr.f32.mxu0 0.0
    %v562 = vand.u32 %v210, 4294901760
    %v563 = vsub.f32 %v210, %v562
    %564 = vmatmul.mubr.f32.gmra.mrb[0].mxu0 %v563
    %v565 = vpop.f32.mrb[0].mxu0
    %v566 = vadd.f32 %v454, %v565
    %v567 = vpop.f32.mrb[0].mxu0
    %v568 = vadd.f32 %v456, %v567
    %569 = vmatprep.mubr.f32.mxu0 0.0
    %v570 = vand.u32 %v213, 4294901760
    %v571 = vsub.f32 %v213, %v570
    %572 = vmatmul.mubr.f32.gmra.mrb[0].mxu0 %v571
    %v573 = vpop.f32.mrb[0].mxu0
    %v574 = vadd.f32 %v461, %v573
    %v575 = vpop.f32.mrb[0].mxu0
    %v576 = vadd.f32 %v463, %v575
    %577 = vdwg.mxu0
    %v578 = vand.u32 %v174, 4294901760
    %579 = vmatprep.subr.mxu0 %v578
    %v580 = vand.u32 %v173, 4294901760
    %581 = vmatpush1.msra.mxu0 %v580
    %v582 = vand.u32 %v176, 4294901760
    %583 = vmatprep.subr.mxu0 %v582
    %v584 = vand.u32 %v175, 4294901760
    %585 = vmatpush1.msra.mxu0 %v584
    %v586 = vand.u32 %v178, 4294901760
    %587 = vmatprep.subr.mxu0 %v586
    %v588 = vand.u32 %v177, 4294901760
    %589 = vmatpush1.msra.mxu0 %v588
    %v590 = vand.u32 %v180, 4294901760
    %591 = vmatprep.subr.mxu0 %v590
    %v592 = vand.u32 %v179, 4294901760
    %593 = vmatpush1.msra.mxu0 %v592
    %594 = vmatprep.subr.mxu0 0.0
    %595 = vmatpush1.msra.mxu0 0.0
    %596 = vmatprep.subr.mxu0 0.0
    %597 = vmatpush1.msra.mxu0 0.0
    %598 = vmatprep.subr.mxu0 0.0
    %599 = vmatpush1.msra.mxu0 0.0
    %600 = vmatprep.subr.mxu0 0.0
    %601 = vmatpush1.msra.mxu0 0.0
    %602 = vmatprep.subr.mxu0 0.0
    %603 = vmatpush1.msra.mxu0 0.0
    %604 = vmatprep.subr.mxu0 0.0
    %605 = vmatpush1.msra.mxu0 0.0
    %606 = vmatprep.subr.mxu0 0.0
    %607 = vmatpush1.msra.mxu0 0.0
    %608 = vmatprep.subr.mxu0 0.0
    %609 = vmatpush1.msra.mxu0 0.0
    %610 = vmatprep.subr.mxu0 0.0
    %611 = vmatpush1.msra.mxu0 0.0
    %612 = vmatprep.subr.mxu0 0.0
    %613 = vmatpush1.msra.mxu0 0.0
    %614 = vmatprep.subr.mxu0 0.0
    %615 = vmatpush1.msra.mxu0 0.0
    %616 = vmatprep.subr.mxu0 0.0
    %617 = vmatpush1.msra.mxu0 0.0
    %618 = vmatprep.subr.mxu0 0.0
    %619 = vmatpush1.msra.mxu0 0.0
    %620 = vmatprep.subr.mxu0 0.0
    %621 = vmatpush1.msra.mxu0 0.0
    %622 = vmatprep.subr.mxu0 0.0
    %623 = vmatpush1.msra.mxu0 0.0
    %624 = vmatprep.subr.mxu0 0.0
    %625 = vmatpush1.msra.mxu0 0.0
    %626 = vmatprep.subr.mxu0 0.0
    %627 = vmatpush1.msra.mxu0 0.0
    %628 = vmatprep.subr.mxu0 0.0
    %629 = vmatpush1.msra.mxu0 0.0
    %630 = vmatprep.subr.mxu0 0.0
    %631 = vmatpush1.msra.mxu0 0.0
    %632 = vmatprep.subr.mxu0 0.0
    %633 = vmatpush1.msra.mxu0 0.0
    %634 = vmatprep.subr.mxu0 0.0
    %635 = vmatpush1.msra.mxu0 0.0
    %636 = vmatprep.subr.mxu0 0.0
    %637 = vmatpush1.msra.mxu0 0.0
    %638 = vmatprep.subr.mxu0 0.0
    %639 = vmatpush1.msra.mxu0 0.0
    %640 = vmatprep.subr.mxu0 0.0
    %641 = vmatpush1.msra.mxu0 0.0
    %642 = vmatprep.subr.mxu0 0.0
    %643 = vmatpush1.msra.mxu0 0.0
    %644 = vmatprep.subr.mxu0 0.0
    %645 = vmatpush1.msra.mxu0 0.0
    %646 = vmatprep.subr.mxu0 0.0
    %647 = vmatpush1.msra.mxu0 0.0
    %648 = vmatprep.subr.mxu0 0.0
    %649 = vmatpush1.msra.mxu0 0.0
    %650 = vmatprep.mubr.f32.mxu0 0.0
    %v651 = vand.u32 %v204, 4294901760
    %v652 = vsub.f32 %v204, %v651
    %v653 = vand.u32 %v652, 4294901760
    %654 = vmatmul.mubr.f32.gmra.mrb[0].mxu0 %v653
    %v655 = vpop.f32.mrb[0].mxu0
    %v656 = vadd.f32 %v550, %v655
    %v657 = vpop.f32.mrb[0].mxu0
    %v658 = vadd.f32 %v552, %v657
    %659 = vmatprep.mubr.f32.mxu0 0.0
    %v660 = vand.u32 %v207, 4294901760
    %v661 = vsub.f32 %v207, %v660
    %v662 = vand.u32 %v661, 4294901760
    %663 = vmatmul.mubr.f32.gmra.mrb[0].mxu0 %v662
    %v664 = vpop.f32.mrb[0].mxu0
    %v665 = vadd.f32 %v558, %v664
    %v666 = vpop.f32.mrb[0].mxu0
    %v667 = vadd.f32 %v560, %v666
    %668 = vmatprep.mubr.f32.mxu0 0.0
    %v669 = vand.u32 %v210, 4294901760
    %v670 = vsub.f32 %v210, %v669
    %v671 = vand.u32 %v670, 4294901760
    %672 = vmatmul.mubr.f32.gmra.mrb[0].mxu0 %v671
    %v673 = vpop.f32.mrb[0].mxu0
    %v674 = vadd.f32 %v566, %v673
    %v675 = vpop.f32.mrb[0].mxu0
    %v676 = vadd.f32 %v568, %v675
    %677 = vmatprep.mubr.f32.mxu0 0.0
    %v678 = vand.u32 %v213, 4294901760
    %v679 = vsub.f32 %v213, %v678
    %v680 = vand.u32 %v679, 4294901760
    %681 = vmatmul.mubr.f32.gmra.mrb[0].mxu0 %v680
    %v682 = vpop.f32.mrb[0].mxu0
    %v683 = vadd.f32 %v574, %v682
    %v684 = vpop.f32.mrb[0].mxu0
    %v685 = vadd.f32 %v576, %v684
    %686 = vdwg.mxu0
    %v687 = vand.u32 %v174, 4294901760
    %v688 = vsub.f32 %v174, %v687
    %v689 = vand.u32 %v688, 4294901760
    %690 = vmatprep.subr.mxu0 %v689
    %v691 = vand.u32 %v173, 4294901760
    %v692 = vsub.f32 %v173, %v691
    %v693 = vand.u32 %v692, 4294901760
    %694 = vmatpush1.msra.mxu0 %v693
    %v695 = vand.u32 %v176, 4294901760
    %v696 = vsub.f32 %v176, %v695
    %v697 = vand.u32 %v696, 4294901760
    %698 = vmatprep.subr.mxu0 %v697
    %v699 = vand.u32 %v175, 4294901760
    %v700 = vsub.f32 %v175, %v699
    %v701 = vand.u32 %v700, 4294901760
    %702 = vmatpush1.msra.mxu0 %v701
    %v703 = vand.u32 %v178, 4294901760
    %v704 = vsub.f32 %v178, %v703
    %v705 = vand.u32 %v704, 4294901760
    %706 = vmatprep.subr.mxu0 %v705
    %v707 = vand.u32 %v177, 4294901760
    %v708 = vsub.f32 %v177, %v707
    %v709 = vand.u32 %v708, 4294901760
    %710 = vmatpush1.msra.mxu0 %v709
    %v711 = vand.u32 %v180, 4294901760
    %v712 = vsub.f32 %v180, %v711
    %v713 = vand.u32 %v712, 4294901760
    %714 = vmatprep.subr.mxu0 %v713
    %v715 = vand.u32 %v179, 4294901760
    %v716 = vsub.f32 %v179, %v715
    %v717 = vand.u32 %v716, 4294901760
    %718 = vmatpush1.msra.mxu0 %v717
    %719 = vmatprep.subr.mxu0 0.0
    %720 = vmatpush1.msra.mxu0 0.0
    %721 = vmatprep.subr.mxu0 0.0
    %722 = vmatpush1.msra.mxu0 0.0
    %723 = vmatprep.subr.mxu0 0.0
    %724 = vmatpush1.msra.mxu0 0.0
    %725 = vmatprep.subr.mxu0 0.0
    %726 = vmatpush1.msra.mxu0 0.0
    %727 = vmatprep.subr.mxu0 0.0
    %728 = vmatpush1.msra.mxu0 0.0
    %729 = vmatprep.subr.mxu0 0.0
    %730 = vmatpush1.msra.mxu0 0.0
    %731 = vmatprep.subr.mxu0 0.0
    %732 = vmatpush1.msra.mxu0 0.0
    %733 = vmatprep.subr.mxu0 0.0
    %734 = vmatpush1.msra.mxu0 0.0
    %735 = vmatprep.subr.mxu0 0.0
    %736 = vmatpush1.msra.mxu0 0.0
    %737 = vmatprep.subr.mxu0 0.0
    %738 = vmatpush1.msra.mxu0 0.0
    %739 = vmatprep.subr.mxu0 0.0
    %740 = vmatpush1.msra.mxu0 0.0
    %741 = vmatprep.subr.mxu0 0.0
    %742 = vmatpush1.msra.mxu0 0.0
    %743 = vmatprep.subr.mxu0 0.0
    %744 = vmatpush1.msra.mxu0 0.0
    %745 = vmatprep.subr.mxu0 0.0
    %746 = vmatpush1.msra.mxu0 0.0
    %747 = vmatprep.subr.mxu0 0.0
    %748 = vmatpush1.msra.mxu0 0.0
    %749 = vmatprep.subr.mxu0 0.0
    %750 = vmatpush1.msra.mxu0 0.0
    %751 = vmatprep.subr.mxu0 0.0
    %752 = vmatpush1.msra.mxu0 0.0
    %753 = vmatprep.subr.mxu0 0.0
    %754 = vmatpush1.msra.mxu0 0.0
    %755 = vmatprep.subr.mxu0 0.0
    %756 = vmatpush1.msra.mxu0 0.0
    %757 = vmatprep.subr.mxu0 0.0
    %758 = vmatpush1.msra.mxu0 0.0
    %759 = vmatprep.subr.mxu0 0.0
    %760 = vmatpush1.msra.mxu0 0.0
    %761 = vmatprep.subr.mxu0 0.0
    %762 = vmatpush1.msra.mxu0 0.0
    %763 = vmatprep.subr.mxu0 0.0
    %764 = vmatpush1.msra.mxu0 0.0
    %765 = vmatprep.subr.mxu0 0.0
    %766 = vmatpush1.msra.mxu0 0.0
    %767 = vmatprep.subr.mxu0 0.0
    %768 = vmatpush1.msra.mxu0 0.0
    %769 = vmatprep.subr.mxu0 0.0
    %770 = vmatpush1.msra.mxu0 0.0
    %771 = vmatprep.subr.mxu0 0.0
    %772 = vmatpush1.msra.mxu0 0.0
    %773 = vmatprep.subr.mxu0 0.0
    %774 = vmatpush1.msra.mxu0 0.0
    %775 = vmatprep.mubr.f32.mxu0 0.0
    %v776 = vand.u32 %v204, 4294901760
    %777 = vmatmul.mubr.f32.gmra.mrb[0].mxu0 %v776
    %v778 = vpop.f32.mrb[0].mxu0
    %v779 = vadd.f32 %v656, %v778
    %v780 = vpop.f32.mrb[0].mxu0
    %v781 = vadd.f32 %v658, %v780
    %782 = vmatprep.mubr.f32.mxu0 0.0
    %v783 = vand.u32 %v207, 4294901760
    %784 = vmatmul.mubr.f32.gmra.mrb[0].mxu0 %v783
    %v785 = vpop.f32.mrb[0].mxu0
    %v786 = vadd.f32 %v665, %v785
    %v787 = vpop.f32.mrb[0].mxu0
    %v788 = vadd.f32 %v667, %v787
    %789 = vmatprep.mubr.f32.mxu0 0.0
    %v790 = vand.u32 %v210, 4294901760
    %791 = vmatmul.mubr.f32.gmra.mrb[0].mxu0 %v790
    %v792 = vpop.f32.mrb[0].mxu0
    %v793 = vadd.f32 %v674, %v792
    %v794 = vpop.f32.mrb[0].mxu0
    %v795 = vadd.f32 %v676, %v794
    %796 = vmatprep.mubr.f32.mxu0 0.0
    %v797 = vand.u32 %v213, 4294901760
    %798 = vmatmul.mubr.f32.gmra.mrb[0].mxu0 %v797
    %v799 = vpop.f32.mrb[0].mxu0
    %v800 = vadd.f32 %v683, %v799
    %v801 = vpop.f32.mrb[0].mxu0
    %v802 = vadd.f32 %v685, %v801
    %803 = vdwg.mxu0
    %v804 = vand.u32 %v174, 4294901760
    %805 = vmatprep.subr.mxu0 %v804
    %v806 = vand.u32 %v173, 4294901760
    %807 = vmatpush1.msra.mxu0 %v806
    %v808 = vand.u32 %v176, 4294901760
    %809 = vmatprep.subr.mxu0 %v808
    %v810 = vand.u32 %v175, 4294901760
    %811 = vmatpush1.msra.mxu0 %v810
    %v812 = vand.u32 %v178, 4294901760
    %813 = vmatprep.subr.mxu0 %v812
    %v814 = vand.u32 %v177, 4294901760
    %815 = vmatpush1.msra.mxu0 %v814
    %v816 = vand.u32 %v180, 4294901760
    %817 = vmatprep.subr.mxu0 %v816
    %v818 = vand.u32 %v179, 4294901760
    %819 = vmatpush1.msra.mxu0 %v818
    %820 = vmatprep.subr.mxu0 0.0
    %821 = vmatpush1.msra.mxu0 0.0
    %822 = vmatprep.subr.mxu0 0.0
    %823 = vmatpush1.msra.mxu0 0.0
    %824 = vmatprep.subr.mxu0 0.0
    %825 = vmatpush1.msra.mxu0 0.0
    %826 = vmatprep.subr.mxu0 0.0
    %827 = vmatpush1.msra.mxu0 0.0
    %828 = vmatprep.subr.mxu0 0.0
    %829 = vmatpush1.msra.mxu0 0.0
    %830 = vmatprep.subr.mxu0 0.0
    %831 = vmatpush1.msra.mxu0 0.0
    %832 = vmatprep.subr.mxu0 0.0
    %833 = vmatpush1.msra.mxu0 0.0
    %834 = vmatprep.subr.mxu0 0.0
    %835 = vmatpush1.msra.mxu0 0.0
    %836 = vmatprep.subr.mxu0 0.0
    %837 = vmatpush1.msra.mxu0 0.0
    %838 = vmatprep.subr.mxu0 0.0
    %839 = vmatpush1.msra.mxu0 0.0
    %840 = vmatprep.subr.mxu0 0.0
    %841 = vmatpush1.msra.mxu0 0.0
    %842 = vmatprep.subr.mxu0 0.0
    %843 = vmatpush1.msra.mxu0 0.0
    %844 = vmatprep.subr.mxu0 0.0
    %845 = vmatpush1.msra.mxu0 0.0
    %846 = vmatprep.subr.mxu0 0.0
    %847 = vmatpush1.msra.mxu0 0.0
    %848 = vmatprep.subr.mxu0 0.0
    %849 = vmatpush1.msra.mxu0 0.0
    %850 = vmatprep.subr.mxu0 0.0
    %851 = vmatpush1.msra.mxu0 0.0
    %852 = vmatprep.subr.mxu0 0.0
    %853 = vmatpush1.msra.mxu0 0.0
    %854 = vmatprep.subr.mxu0 0.0
    %855 = vmatpush1.msra.mxu0 0.0
    %856 = vmatprep.subr.mxu0 0.0
    %857 = vmatpush1.msra.mxu0 0.0
    %858 = vmatprep.subr.mxu0 0.0
    %859 = vmatpush1.msra.mxu0 0.0
    %860 = vmatprep.subr.mxu0 0.0
    %861 = vmatpush1.msra.mxu0 0.0
    %862 = vmatprep.subr.mxu0 0.0
    %863 = vmatpush1.msra.mxu0 0.0
    %864 = vmatprep.subr.mxu0 0.0
    %865 = vmatpush1.msra.mxu0 0.0
    %866 = vmatprep.subr.mxu0 0.0
    %867 = vmatpush1.msra.mxu0 0.0
    %868 = vmatprep.subr.mxu0 0.0
    %869 = vmatpush1.msra.mxu0 0.0
    %870 = vmatprep.subr.mxu0 0.0
    %871 = vmatpush1.msra.mxu0 0.0
    %872 = vmatprep.subr.mxu0 0.0
    %873 = vmatpush1.msra.mxu0 0.0
    %874 = vmatprep.subr.mxu0 0.0
    %875 = vmatpush1.msra.mxu0 0.0
    %876 = vmatprep.mubr.f32.mxu0 0.0
    %v877 = vand.u32 %v204, 4294901760
    %878 = vmatmul.mubr.f32.gmra.mrb[0].mxu0 %v877
    %v879 = vpop.f32.mrb[0].mxu0
    %v880 = vadd.f32 %v779, %v879
    %v881 = vpop.f32.mrb[0].mxu0
    %v882 = vadd.f32 %v781, %v881
    %883 = vmatprep.mubr.f32.mxu0 0.0
    %v884 = vand.u32 %v207, 4294901760
    %885 = vmatmul.mubr.f32.gmra.mrb[0].mxu0 %v884
    %v886 = vpop.f32.mrb[0].mxu0
    %v887 = vadd.f32 %v786, %v886
    %v888 = vpop.f32.mrb[0].mxu0
    %v889 = vadd.f32 %v788, %v888
    %890 = vmatprep.mubr.f32.mxu0 0.0
    %v891 = vand.u32 %v210, 4294901760
    %892 = vmatmul.mubr.f32.gmra.mrb[0].mxu0 %v891
    %v893 = vpop.f32.mrb[0].mxu0
    %v894 = vadd.f32 %v793, %v893
    %v895 = vpop.f32.mrb[0].mxu0
    %v896 = vadd.f32 %v795, %v895
    %897 = vmatprep.mubr.f32.mxu0 0.0
    %v898 = vand.u32 %v213, 4294901760
    %899 = vmatmul.mubr.f32.gmra.mrb[0].mxu0 %v898
    %v900 = vpop.f32.mrb[0].mxu0
    %v901 = vadd.f32 %v800, %v900
    %v902 = vpop.f32.mrb[0].mxu0
    %v903 = vadd.f32 %v802, %v902
    %904 = vdwg.mxu0
    %v905 = vtanh.pop %v880
    %v906 = vtanh.pop %v882
    %v907 = vtanh.pop %v887
    %v908 = vtanh.pop %v889
    %v909 = vtanh.pop %v894
    %v910 = vtanh.pop %v896
    %v911 = vtanh.pop %v901
    %v912 = vtanh.pop %v903
    %s913 = scalar_lea.vmem [#allocation2], 64
    %v914 = vld [vmem:[%s913] sm:$0xff]
    %v915 = vld [vmem:[%s913 + $0x8] sm:$0xff]
    %v916 = vld [vmem:[%s913 + $0x10] sm:$0xff]
    %v917 = vld [vmem:[%s913 + $0x18] sm:$0xff]
    %918 = vset.pattern.permute.xlu0 2
    %919 = vperm.xlu0 %918, %v141
    %v920 = vpop.permute.xlu0 %919
    %922 = vset.pattern.permute.xlu0 2
    %923 = vperm.xlu0 %922, %v142
    %v924 = vpop.permute.xlu0 %923
    %926 = vset.pattern.permute.xlu0 2
    %927 = vperm.xlu0 %926, %v143
    %v928 = vpop.permute.xlu0 %927
    %930 = vset.pattern.permute.xlu0 2
    %931 = vperm.xlu0 %930, %v144
    %v932 = vpop.permute.xlu0 %931
    %v935 = vsel %vm202, %v914, 0
    %v938 = vsel %vm202, %v915, 0
    %v941 = vsel %vm202, %v916, 0
    %v944 = vsel %vm202, %v917, 0
    %v946 = vand.u32 %v906, 4294901760
    %947 = vmatprep.subr.mxu0 %v946
    %v948 = vand.u32 %v905, 4294901760
    %949 = vmatpush1.msra.mxu0 %v948
    %v950 = vand.u32 %v908, 4294901760
    %951 = vmatprep.subr.mxu0 %v950
    %v952 = vand.u32 %v907, 4294901760
    %953 = vmatpush1.msra.mxu0 %v952
    %v954 = vand.u32 %v910, 4294901760
    %955 = vmatprep.subr.mxu0 %v954
    %v956 = vand.u32 %v909, 4294901760
    %957 = vmatpush1.msra.mxu0 %v956
    %v958 = vand.u32 %v912, 4294901760
    %959 = vmatprep.subr.mxu0 %v958
    %v960 = vand.u32 %v911, 4294901760
    %961 = vmatpush1.msra.mxu0 %v960
    %962 = vmatprep.subr.mxu0 0.0
    %963 = vmatpush1.msra.mxu0 0.0
    %964 = vmatprep.subr.mxu0 0.0
    %965 = vmatpush1.msra.mxu0 0.0
    %966 = vmatprep.subr.mxu0 0.0
    %967 = vmatpush1.msra.mxu0 0.0
    %968 = vmatprep.subr.mxu0 0.0
    %969 = vmatpush1.msra.mxu0 0.0
    %970 = vmatprep.subr.mxu0 0.0
    %971 = vmatpush1.msra.mxu0 0.0
    %972 = vmatprep.subr.mxu0 0.0
    %973 = vmatpush1.msra.mxu0 0.0
    %974 = vmatprep.subr.mxu0 0.0
    %975 = vmatpush1.msra.mxu0 0.0
    %976 = vmatprep.subr.mxu0 0.0
    %977 = vmatpush1.msra.mxu0 0.0
    %978 = vmatprep.subr.mxu0 0.0
    %979 = vmatpush1.msra.mxu0 0.0
    %980 = vmatprep.subr.mxu0 0.0
    %981 = vmatpush1.msra.mxu0 0.0
    %982 = vmatprep.subr.mxu0 0.0
    %983 = vmatpush1.msra.mxu0 0.0
    %984 = vmatprep.subr.mxu0 0.0
    %985 = vmatpush1.msra.mxu0 0.0
    %986 = vmatprep.subr.mxu0 0.0
    %987 = vmatpush1.msra.mxu0 0.0
    %988 = vmatprep.subr.mxu0 0.0
    %989 = vmatpush1.msra.mxu0 0.0
    %990 = vmatprep.subr.mxu0 0.0
    %991 = vmatpush1.msra.mxu0 0.0
    %992 = vmatprep.subr.mxu0 0.0
    %993 = vmatpush1.msra.mxu0 0.0
    %994 = vmatprep.subr.mxu0 0.0
    %995 = vmatpush1.msra.mxu0 0.0
    %996 = vmatprep.subr.mxu0 0.0
    %997 = vmatpush1.msra.mxu0 0.0
    %998 = vmatprep.subr.mxu0 0.0
    %999 = vmatpush1.msra.mxu0 0.0
    %1000 = vmatprep.subr.mxu0 0.0
    %1001 = vmatpush1.msra.mxu0 0.0
    %1002 = vmatprep.subr.mxu0 0.0
    %1003 = vmatpush1.msra.mxu0 0.0
    %1004 = vmatprep.subr.mxu0 0.0
    %1005 = vmatpush1.msra.mxu0 0.0
    %1006 = vmatprep.subr.mxu0 0.0
    %1007 = vmatpush1.msra.mxu0 0.0
    %1008 = vmatprep.subr.mxu0 0.0
    %1009 = vmatpush1.msra.mxu0 0.0
    %1010 = vmatprep.subr.mxu0 0.0
    %1011 = vmatpush1.msra.mxu0 0.0
    %1012 = vmatprep.subr.mxu0 0.0
    %1013 = vmatpush1.msra.mxu0 0.0
    %1014 = vmatprep.subr.mxu0 0.0
    %1015 = vmatpush1.msra.mxu0 0.0
    %1016 = vmatprep.subr.mxu0 0.0
    %1017 = vmatpush1.msra.mxu0 0.0
    %1018 = vmatprep.mubr.f32.mxu0 0.0
    %v1019 = vand.u32 %v935, 4294901760
    %v1020 = vsub.f32 %v935, %v1019
    %v1021 = vand.u32 %v1020, 4294901760
    %v1022 = vsub.f32 %v1020, %v1021
    %v1023 = vand.u32 %v1022, 4294901760
    %1024 = vmatmul.mubr.f32.gmra.mrb[0].mxu0 %v1023
    %v1025 = vpop.f32.mrb[0].mxu0
    %v1026 = vadd.f32 %v920, %v1025
    %v1027 = vpop.f32.mrb[0].mxu0
    %v1028 = vadd.f32 %v920, %v1027
    %1029 = vmatprep.mubr.f32.mxu0 0.0
    %v1030 = vand.u32 %v938, 4294901760
    %v1031 = vsub.f32 %v938, %v1030
    %v1032 = vand.u32 %v1031, 4294901760
    %v1033 = vsub.f32 %v1031, %v1032
    %v1034 = vand.u32 %v1033, 4294901760
    %1035 = vmatmul.mubr.f32.gmra.mrb[0].mxu0 %v1034
    %v1036 = vpop.f32.mrb[0].mxu0
    %v1037 = vadd.f32 %v924, %v1036
    %v1038 = vpop.f32.mrb[0].mxu0
    %v1039 = vadd.f32 %v924, %v1038
    %1040 = vmatprep.mubr.f32.mxu0 0.0
    %v1041 = vand.u32 %v941, 4294901760
    %v1042 = vsub.f32 %v941, %v1041
    %v1043 = vand.u32 %v1042, 4294901760
    %v1044 = vsub.f32 %v1042, %v1043
    %v1045 = vand.u32 %v1044, 4294901760
    %1046 = vmatmul.mubr.f32.gmra.mrb[0].mxu0 %v1045
    %v1047 = vpop.f32.mrb[0].mxu0
    %v1048 = vadd.f32 %v928, %v1047
    %v1049 = vpop.f32.mrb[0].mxu0
    %v1050 = vadd.f32 %v928, %v1049
    %1051 = vmatprep.mubr.f32.mxu0 0.0
    %v1052 = vand.u32 %v944, 4294901760
    %v1053 = vsub.f32 %v944, %v1052
    %v1054 = vand.u32 %v1053, 4294901760
    %v1055 = vsub.f32 %v1053, %v1054
    %v1056 = vand.u32 %v1055, 4294901760
    %1057 = vmatmul.mubr.f32.gmra.mrb[0].mxu0 %v1056
    %v1058 = vpop.f32.mrb[0].mxu0
    %v1059 = vadd.f32 %v932, %v1058
    %v1060 = vpop.f32.mrb[0].mxu0
    %v1061 = vadd.f32 %v932, %v1060
    %1062 = vdwg.mxu0
    %v1063 = vand.u32 %v906, 4294901760
    %v1064 = vsub.f32 %v906, %v1063
    %v1065 = vand.u32 %v1064, 4294901760
    %v1066 = vsub.f32 %v1064, %v1065
    %v1067 = vand.u32 %v1066, 4294901760
    %1068 = vmatprep.subr.mxu0 %v1067
    %v1069 = vand.u32 %v905, 4294901760
    %v1070 = vsub.f32 %v905, %v1069
    %v1071 = vand.u32 %v1070, 4294901760
    %v1072 = vsub.f32 %v1070, %v1071
    %v1073 = vand.u32 %v1072, 4294901760
    %1074 = vmatpush1.msra.mxu0 %v1073
    %v1075 = vand.u32 %v908, 4294901760
    %v1076 = vsub.f32 %v908, %v1075
    %v1077 = vand.u32 %v1076, 4294901760
    %v1078 = vsub.f32 %v1076, %v1077
    %v1079 = vand.u32 %v1078, 4294901760
    %1080 = vmatprep.subr.mxu0 %v1079
    %v1081 = vand.u32 %v907, 4294901760
    %v1082 = vsub.f32 %v907, %v1081
    %v1083 = vand.u32 %v1082, 4294901760
    %v1084 = vsub.f32 %v1082, %v1083
    %v1085 = vand.u32 %v1084, 4294901760
    %1086 = vmatpush1.msra.mxu0 %v1085
    %v1087 = vand.u32 %v910, 4294901760
    %v1088 = vsub.f32 %v910, %v1087
    %v1089 = vand.u32 %v1088, 4294901760
    %v1090 = vsub.f32 %v1088, %v1089
    %v1091 = vand.u32 %v1090, 4294901760
    %1092 = vmatprep.subr.mxu0 %v1091
    %v1093 = vand.u32 %v909, 4294901760
    %v1094 = vsub.f32 %v909, %v1093
    %v1095 = vand.u32 %v1094, 4294901760
    %v1096 = vsub.f32 %v1094, %v1095
    %v1097 = vand.u32 %v1096, 4294901760
    %1098 = vmatpush1.msra.mxu0 %v1097
    %v1099 = vand.u32 %v912, 4294901760
    %v1100 = vsub.f32 %v912, %v1099
    %v1101 = vand.u32 %v1100, 4294901760
    %v1102 = vsub.f32 %v1100, %v1101
    %v1103 = vand.u32 %v1102, 4294901760
    %1104 = vmatprep.subr.mxu0 %v1103
    %v1105 = vand.u32 %v911, 4294901760
    %v1106 = vsub.f32 %v911, %v1105
    %v1107 = vand.u32 %v1106, 4294901760
    %v1108 = vsub.f32 %v1106, %v1107
    %v1109 = vand.u32 %v1108, 4294901760
    %1110 = vmatpush1.msra.mxu0 %v1109
    %1111 = vmatprep.subr.mxu0 0.0
    %1112 = vmatpush1.msra.mxu0 0.0
    %1113 = vmatprep.subr.mxu0 0.0
    %1114 = vmatpush1.msra.mxu0 0.0
    %1115 = vmatprep.subr.mxu0 0.0
    %1116 = vmatpush1.msra.mxu0 0.0
    %1117 = vmatprep.subr.mxu0 0.0
    %1118 = vmatpush1.msra.mxu0 0.0
    %1119 = vmatprep.subr.mxu0 0.0
    %1120 = vmatpush1.msra.mxu0 0.0
    %1121 = vmatprep.subr.mxu0 0.0
    %1122 = vmatpush1.msra.mxu0 0.0
    %1123 = vmatprep.subr.mxu0 0.0
    %1124 = vmatpush1.msra.mxu0 0.0
    %1125 = vmatprep.subr.mxu0 0.0
    %1126 = vmatpush1.msra.mxu0 0.0
    %1127 = vmatprep.subr.mxu0 0.0
    %1128 = vmatpush1.msra.mxu0 0.0
    %1129 = vmatprep.subr.mxu0 0.0
    %1130 = vmatpush1.msra.mxu0 0.0
    %1131 = vmatprep.subr.mxu0 0.0
    %1132 = vmatpush1.msra.mxu0 0.0
    %1133 = vmatprep.subr.mxu0 0.0
    %1134 = vmatpush1.msra.mxu0 0.0
    %1135 = vmatprep.subr.mxu0 0.0
    %1136 = vmatpush1.msra.mxu0 0.0
    %1137 = vmatprep.subr.mxu0 0.0
    %1138 = vmatpush1.msra.mxu0 0.0
    %1139 = vmatprep.subr.mxu0 0.0
    %1140 = vmatpush1.msra.mxu0 0.0
    %1141 = vmatprep.subr.mxu0 0.0
    %1142 = vmatpush1.msra.mxu0 0.0
    %1143 = vmatprep.subr.mxu0 0.0
    %1144 = vmatpush1.msra.mxu0 0.0
    %1145 = vmatprep.subr.mxu0 0.0
    %1146 = vmatpush1.msra.mxu0 0.0
    %1147 = vmatprep.subr.mxu0 0.0
    %1148 = vmatpush1.msra.mxu0 0.0
    %1149 = vmatprep.subr.mxu0 0.0
    %1150 = vmatpush1.msra.mxu0 0.0
    %1151 = vmatprep.subr.mxu0 0.0
    %1152 = vmatpush1.msra.mxu0 0.0
    %1153 = vmatprep.subr.mxu0 0.0
    %1154 = vmatpush1.msra.mxu0 0.0
    %1155 = vmatprep.subr.mxu0 0.0
    %1156 = vmatpush1.msra.mxu0 0.0
    %1157 = vmatprep.subr.mxu0 0.0
    %1158 = vmatpush1.msra.mxu0 0.0
    %1159 = vmatprep.subr.mxu0 0.0
    %1160 = vmatpush1.msra.mxu0 0.0
    %1161 = vmatprep.subr.mxu0 0.0
    %1162 = vmatpush1.msra.mxu0 0.0
    %1163 = vmatprep.subr.mxu0 0.0
    %1164 = vmatpush1.msra.mxu0 0.0
    %1165 = vmatprep.subr.mxu0 0.0
    %1166 = vmatpush1.msra.mxu0 0.0
    %1167 = vmatprep.mubr.f32.mxu0 0.0
    %v1168 = vand.u32 %v935, 4294901760
    %1169 = vmatmul.mubr.f32.gmra.mrb[0].mxu0 %v1168
    %v1170 = vpop.f32.mrb[0].mxu0
    %v1171 = vadd.f32 %v1026, %v1170
    %v1172 = vpop.f32.mrb[0].mxu0
    %v1173 = vadd.f32 %v1028, %v1172
    %1174 = vmatprep.mubr.f32.mxu0 0.0
    %v1175 = vand.u32 %v938, 4294901760
    %1176 = vmatmul.mubr.f32.gmra.mrb[0].mxu0 %v1175
    %v1177 = vpop.f32.mrb[0].mxu0
    %v1178 = vadd.f32 %v1037, %v1177
    %v1179 = vpop.f32.mrb[0].mxu0
    %v1180 = vadd.f32 %v1039, %v1179
    %1181 = vmatprep.mubr.f32.mxu0 0.0
    %v1182 = vand.u32 %v941, 4294901760
    %1183 = vmatmul.mubr.f32.gmra.mrb[0].mxu0 %v1182
    %v1184 = vpop.f32.mrb[0].mxu0
    %v1185 = vadd.f32 %v1048, %v1184
    %v1186 = vpop.f32.mrb[0].mxu0
    %v1187 = vadd.f32 %v1050, %v1186
    %1188 = vmatprep.mubr.f32.mxu0 0.0
    %v1189 = vand.u32 %v944, 4294901760
    %1190 = vmatmul.mubr.f32.gmra.mrb[0].mxu0 %v1189
    %v1191 = vpop.f32.mrb[0].mxu0
    %v1192 = vadd.f32 %v1059, %v1191
    %v1193 = vpop.f32.mrb[0].mxu0
    %v1194 = vadd.f32 %v1061, %v1193
    %1195 = vdwg.mxu0
    %v1196 = vand.u32 %v906, 4294901760
    %v1197 = vsub.f32 %v906, %v1196
    %1198 = vmatprep.subr.mxu0 %v1197
    %v1199 = vand.u32 %v905, 4294901760
    %v1200 = vsub.f32 %v905, %v1199
    %1201 = vmatpush1.msra.mxu0 %v1200
    %v1202 = vand.u32 %v908, 4294901760
    %v1203 = vsub.f32 %v908, %v1202
    %1204 = vmatprep.subr.mxu0 %v1203
    %v1205 = vand.u32 %v907, 4294901760
    %v1206 = vsub.f32 %v907, %v1205
    %1207 = vmatpush1.msra.mxu0 %v1206
    %v1208 = vand.u32 %v910, 4294901760
    %v1209 = vsub.f32 %v910, %v1208
    %1210 = vmatprep.subr.mxu0 %v1209
    %v1211 = vand.u32 %v909, 4294901760
    %v1212 = vsub.f32 %v909, %v1211
    %1213 = vmatpush1.msra.mxu0 %v1212
    %v1214 = vand.u32 %v912, 4294901760
    %v1215 = vsub.f32 %v912, %v1214
    %1216 = vmatprep.subr.mxu0 %v1215
    %v1217 = vand.u32 %v911, 4294901760
    %v1218 = vsub.f32 %v911, %v1217
    %1219 = vmatpush1.msra.mxu0 %v1218
    %1220 = vmatprep.subr.mxu0 0.0
    %1221 = vmatpush1.msra.mxu0 0.0
    %1222 = vmatprep.subr.mxu0 0.0
    %1223 = vmatpush1.msra.mxu0 0.0
    %1224 = vmatprep.subr.mxu0 0.0
    %1225 = vmatpush1.msra.mxu0 0.0
    %1226 = vmatprep.subr.mxu0 0.0
    %1227 = vmatpush1.msra.mxu0 0.0
    %1228 = vmatprep.subr.mxu0 0.0
    %1229 = vmatpush1.msra.mxu0 0.0
    %1230 = vmatprep.subr.mxu0 0.0
    %1231 = vmatpush1.msra.mxu0 0.0
    %1232 = vmatprep.subr.mxu0 0.0
    %1233 = vmatpush1.msra.mxu0 0.0
    %1234 = vmatprep.subr.mxu0 0.0
    %1235 = vmatpush1.msra.mxu0 0.0
    %1236 = vmatprep.subr.mxu0 0.0
    %1237 = vmatpush1.msra.mxu0 0.0
    %1238 = vmatprep.subr.mxu0 0.0
    %1239 = vmatpush1.msra.mxu0 0.0
    %1240 = vmatprep.subr.mxu0 0.0
    %1241 = vmatpush1.msra.mxu0 0.0
    %1242 = vmatprep.subr.mxu0 0.0
    %1243 = vmatpush1.msra.mxu0 0.0
    %1244 = vmatprep.subr.mxu0 0.0
    %1245 = vmatpush1.msra.mxu0 0.0
    %1246 = vmatprep.subr.mxu0 0.0
    %1247 = vmatpush1.msra.mxu0 0.0
    %1248 = vmatprep.subr.mxu0 0.0
    %1249 = vmatpush1.msra.mxu0 0.0
    %1250 = vmatprep.subr.mxu0 0.0
    %1251 = vmatpush1.msra.mxu0 0.0
    %1252 = vmatprep.subr.mxu0 0.0
    %1253 = vmatpush1.msra.mxu0 0.0
    %1254 = vmatprep.subr.mxu0 0.0
    %1255 = vmatpush1.msra.mxu0 0.0
    %1256 = vmatprep.subr.mxu0 0.0
    %1257 = vmatpush1.msra.mxu0 0.0
    %1258 = vmatprep.subr.mxu0 0.0
    %1259 = vmatpush1.msra.mxu0 0.0
    %1260 = vmatprep.subr.mxu0 0.0
    %1261 = vmatpush1.msra.mxu0 0.0
    %1262 = vmatprep.subr.mxu0 0.0
    %1263 = vmatpush1.msra.mxu0 0.0
    %1264 = vmatprep.subr.mxu0 0.0
    %1265 = vmatpush1.msra.mxu0 0.0
    %1266 = vmatprep.subr.mxu0 0.0
    %1267 = vmatpush1.msra.mxu0 0.0
    %1268 = vmatprep.subr.mxu0 0.0
    %1269 = vmatpush1.msra.mxu0 0.0
    %1270 = vmatprep.subr.mxu0 0.0
    %1271 = vmatpush1.msra.mxu0 0.0
    %1272 = vmatprep.subr.mxu0 0.0
    %1273 = vmatpush1.msra.mxu0 0.0
    %1274 = vmatprep.subr.mxu0 0.0
    %1275 = vmatpush1.msra.mxu0 0.0
    %1276 = vmatprep.mubr.f32.mxu0 0.0
    %v1277 = vand.u32 %v935, 4294901760
    %v1278 = vsub.f32 %v935, %v1277
    %1279 = vmatmul.mubr.f32.gmra.mrb[0].mxu0 %v1278
    %v1280 = vpop.f32.mrb[0].mxu0
    %v1281 = vadd.f32 %v1171, %v1280
    %v1282 = vpop.f32.mrb[0].mxu0
    %v1283 = vadd.f32 %v1173, %v1282
    %1284 = vmatprep.mubr.f32.mxu0 0.0
    %v1285 = vand.u32 %v938, 4294901760
    %v1286 = vsub.f32 %v938, %v1285
    %1287 = vmatmul.mubr.f32.gmra.mrb[0].mxu0 %v1286
    %v1288 = vpop.f32.mrb[0].mxu0
    %v1289 = vadd.f32 %v1178, %v1288
    %v1290 = vpop.f32.mrb[0].mxu0
    %v1291 = vadd.f32 %v1180, %v1290
    %1292 = vmatprep.mubr.f32.mxu0 0.0
    %v1293 = vand.u32 %v941, 4294901760
    %v1294 = vsub.f32 %v941, %v1293
    %1295 = vmatmul.mubr.f32.gmra.mrb[0].mxu0 %v1294
    %v1296 = vpop.f32.mrb[0].mxu0
    %v1297 = vadd.f32 %v1185, %v1296
    %v1298 = vpop.f32.mrb[0].mxu0
    %v1299 = vadd.f32 %v1187, %v1298
    %1300 = vmatprep.mubr.f32.mxu0 0.0
    %v1301 = vand.u32 %v944, 4294901760
    %v1302 = vsub.f32 %v944, %v1301
    %1303 = vmatmul.mubr.f32.gmra.mrb[0].mxu0 %v1302
    %v1304 = vpop.f32.mrb[0].mxu0
    %v1305 = vadd.f32 %v1192, %v1304
    %v1306 = vpop.f32.mrb[0].mxu0
    %v1307 = vadd.f32 %v1194, %v1306
    %1308 = vdwg.mxu0
    %v1309 = vand.u32 %v906, 4294901760
    %1310 = vmatprep.subr.mxu0 %v1309
    %v1311 = vand.u32 %v905, 4294901760
    %1312 = vmatpush1.msra.mxu0 %v1311
    %v1313 = vand.u32 %v908, 4294901760
    %1314 = vmatprep.subr.mxu0 %v1313
    %v1315 = vand.u32 %v907, 4294901760
    %1316 = vmatpush1.msra.mxu0 %v1315
    %v1317 = vand.u32 %v910, 4294901760
    %1318 = vmatprep.subr.mxu0 %v1317
    %v1319 = vand.u32 %v909, 4294901760
    %1320 = vmatpush1.msra.mxu0 %v1319
    %v1321 = vand.u32 %v912, 4294901760
    %1322 = vmatprep.subr.mxu0 %v1321
    %v1323 = vand.u32 %v911, 4294901760
    %1324 = vmatpush1.msra.mxu0 %v1323
    %1325 = vmatprep.subr.mxu0 0.0
    %1326 = vmatpush1.msra.mxu0 0.0
    %1327 = vmatprep.subr.mxu0 0.0
    %1328 = vmatpush1.msra.mxu0 0.0
    %1329 = vmatprep.subr.mxu0 0.0
    %1330 = vmatpush1.msra.mxu0 0.0
    %1331 = vmatprep.subr.mxu0 0.0
    %1332 = vmatpush1.msra.mxu0 0.0
    %1333 = vmatprep.subr.mxu0 0.0
    %1334 = vmatpush1.msra.mxu0 0.0
    %1335 = vmatprep.subr.mxu0 0.0
    %1336 = vmatpush1.msra.mxu0 0.0
    %1337 = vmatprep.subr.mxu0 0.0
    %1338 = vmatpush1.msra.mxu0 0.0
    %1339 = vmatprep.subr.mxu0 0.0
    %1340 = vmatpush1.msra.mxu0 0.0
    %1341 = vmatprep.subr.mxu0 0.0
    %1342 = vmatpush1.msra.mxu0 0.0
    %1343 = vmatprep.subr.mxu0 0.0
    %1344 = vmatpush1.msra.mxu0 0.0
    %1345 = vmatprep.subr.mxu0 0.0
    %1346 = vmatpush1.msra.mxu0 0.0
    %1347 = vmatprep.subr.mxu0 0.0
    %1348 = vmatpush1.msra.mxu0 0.0
    %1349 = vmatprep.subr.mxu0 0.0
    %1350 = vmatpush1.msra.mxu0 0.0
    %1351 = vmatprep.subr.mxu0 0.0
    %1352 = vmatpush1.msra.mxu0 0.0
    %1353 = vmatprep.subr.mxu0 0.0
    %1354 = vmatpush1.msra.mxu0 0.0
    %1355 = vmatprep.subr.mxu0 0.0
    %1356 = vmatpush1.msra.mxu0 0.0
    %1357 = vmatprep.subr.mxu0 0.0
    %1358 = vmatpush1.msra.mxu0 0.0
    %1359 = vmatprep.subr.mxu0 0.0
    %1360 = vmatpush1.msra.mxu0 0.0
    %1361 = vmatprep.subr.mxu0 0.0
    %1362 = vmatpush1.msra.mxu0 0.0
    %1363 = vmatprep.subr.mxu0 0.0
    %1364 = vmatpush1.msra.mxu0 0.0
    %1365 = vmatprep.subr.mxu0 0.0
    %1366 = vmatpush1.msra.mxu0 0.0
    %1367 = vmatprep.subr.mxu0 0.0
    %1368 = vmatpush1.msra.mxu0 0.0
    %1369 = vmatprep.subr.mxu0 0.0
    %1370 = vmatpush1.msra.mxu0 0.0
    %1371 = vmatprep.subr.mxu0 0.0
    %1372 = vmatpush1.msra.mxu0 0.0
    %1373 = vmatprep.subr.mxu0 0.0
    %1374 = vmatpush1.msra.mxu0 0.0
    %1375 = vmatprep.subr.mxu0 0.0
    %1376 = vmatpush1.msra.mxu0 0.0
    %1377 = vmatprep.subr.mxu0 0.0
    %1378 = vmatpush1.msra.mxu0 0.0
    %1379 = vmatprep.subr.mxu0 0.0
    %1380 = vmatpush1.msra.mxu0 0.0
    %1381 = vmatprep.mubr.f32.mxu0 0.0
    %v1382 = vand.u32 %v935, 4294901760
    %v1383 = vsub.f32 %v935, %v1382
    %v1384 = vand.u32 %v1383, 4294901760
    %1385 = vmatmul.mubr.f32.gmra.mrb[0].mxu0 %v1384
    %v1386 = vpop.f32.mrb[0].mxu0
    %v1387 = vadd.f32 %v1281, %v1386
    %v1388 = vpop.f32.mrb[0].mxu0
    %v1389 = vadd.f32 %v1283, %v1388
    %1390 = vmatprep.mubr.f32.mxu0 0.0
    %v1391 = vand.u32 %v938, 4294901760
    %v1392 = vsub.f32 %v938, %v1391
    %v1393 = vand.u32 %v1392, 4294901760
    %1394 = vmatmul.mubr.f32.gmra.mrb[0].mxu0 %v1393
    %v1395 = vpop.f32.mrb[0].mxu0
    %v1396 = vadd.f32 %v1289, %v1395
    %v1397 = vpop.f32.mrb[0].mxu0
    %v1398 = vadd.f32 %v1291, %v1397
    %1399 = vmatprep.mubr.f32.mxu0 0.0
    %v1400 = vand.u32 %v941, 4294901760
    %v1401 = vsub.f32 %v941, %v1400
    %v1402 = vand.u32 %v1401, 4294901760
    %1403 = vmatmul.mubr.f32.gmra.mrb[0].mxu0 %v1402
    %v1404 = vpop.f32.mrb[0].mxu0
    %v1405 = vadd.f32 %v1297, %v1404
    %v1406 = vpop.f32.mrb[0].mxu0
    %v1407 = vadd.f32 %v1299, %v1406
    %1408 = vmatprep.mubr.f32.mxu0 0.0
    %v1409 = vand.u32 %v944, 4294901760
    %v1410 = vsub.f32 %v944, %v1409
    %v1411 = vand.u32 %v1410, 4294901760
    %1412 = vmatmul.mubr.f32.gmra.mrb[0].mxu0 %v1411
    %v1413 = vpop.f32.mrb[0].mxu0
    %v1414 = vadd.f32 %v1305, %v1413
    %v1415 = vpop.f32.mrb[0].mxu0
    %v1416 = vadd.f32 %v1307, %v1415
    %1417 = vdwg.mxu0
    %v1418 = vand.u32 %v906, 4294901760
    %v1419 = vsub.f32 %v906, %v1418
    %v1420 = vand.u32 %v1419, 4294901760
    %1421 = vmatprep.subr.mxu0 %v1420
    %v1422 = vand.u32 %v905, 4294901760
    %v1423 = vsub.f32 %v905, %v1422
    %v1424 = vand.u32 %v1423, 4294901760
    %1425 = vmatpush1.msra.mxu0 %v1424
    %v1426 = vand.u32 %v908, 4294901760
    %v1427 = vsub.f32 %v908, %v1426
    %v1428 = vand.u32 %v1427, 4294901760
    %1429 = vmatprep.subr.mxu0 %v1428
    %v1430 = vand.u32 %v907, 4294901760
    %v1431 = vsub.f32 %v907, %v1430
    %v1432 = vand.u32 %v1431, 4294901760
    %1433 = vmatpush1.msra.mxu0 %v1432
    %v1434 = vand.u32 %v910, 4294901760
    %v1435 = vsub.f32 %v910, %v1434
    %v1436 = vand.u32 %v1435, 4294901760
    %1437 = vmatprep.subr.mxu0 %v1436
    %v1438 = vand.u32 %v909, 4294901760
    %v1439 = vsub.f32 %v909, %v1438
    %v1440 = vand.u32 %v1439, 4294901760
    %1441 = vmatpush1.msra.mxu0 %v1440
    %v1442 = vand.u32 %v912, 4294901760
    %v1443 = vsub.f32 %v912, %v1442
    %v1444 = vand.u32 %v1443, 4294901760
    %1445 = vmatprep.subr.mxu0 %v1444
    %v1446 = vand.u32 %v911, 4294901760
    %v1447 = vsub.f32 %v911, %v1446
    %v1448 = vand.u32 %v1447, 4294901760
    %1449 = vmatpush1.msra.mxu0 %v1448
    %1450 = vmatprep.subr.mxu0 0.0
    %1451 = vmatpush1.msra.mxu0 0.0
    %1452 = vmatprep.subr.mxu0 0.0
    %1453 = vmatpush1.msra.mxu0 0.0
    %1454 = vmatprep.subr.mxu0 0.0
    %1455 = vmatpush1.msra.mxu0 0.0
    %1456 = vmatprep.subr.mxu0 0.0
    %1457 = vmatpush1.msra.mxu0 0.0
    %1458 = vmatprep.subr.mxu0 0.0
    %1459 = vmatpush1.msra.mxu0 0.0
    %1460 = vmatprep.subr.mxu0 0.0
    %1461 = vmatpush1.msra.mxu0 0.0
    %1462 = vmatprep.subr.mxu0 0.0
    %1463 = vmatpush1.msra.mxu0 0.0
    %1464 = vmatprep.subr.mxu0 0.0
    %1465 = vmatpush1.msra.mxu0 0.0
    %1466 = vmatprep.subr.mxu0 0.0
    %1467 = vmatpush1.msra.mxu0 0.0
    %1468 = vmatprep.subr.mxu0 0.0
    %1469 = vmatpush1.msra.mxu0 0.0
    %1470 = vmatprep.subr.mxu0 0.0
    %1471 = vmatpush1.msra.mxu0 0.0
    %1472 = vmatprep.subr.mxu0 0.0
    %1473 = vmatpush1.msra.mxu0 0.0
    %1474 = vmatprep.subr.mxu0 0.0
    %1475 = vmatpush1.msra.mxu0 0.0
    %1476 = vmatprep.subr.mxu0 0.0
    %1477 = vmatpush1.msra.mxu0 0.0
    %1478 = vmatprep.subr.mxu0 0.0
    %1479 = vmatpush1.msra.mxu0 0.0
    %1480 = vmatprep.subr.mxu0 0.0
    %1481 = vmatpush1.msra.mxu0 0.0
    %1482 = vmatprep.subr.mxu0 0.0
    %1483 = vmatpush1.msra.mxu0 0.0
    %1484 = vmatprep.subr.mxu0 0.0
    %1485 = vmatpush1.msra.mxu0 0.0
    %1486 = vmatprep.subr.mxu0 0.0
    %1487 = vmatpush1.msra.mxu0 0.0
    %1488 = vmatprep.subr.mxu0 0.0
    %1489 = vmatpush1.msra.mxu0 0.0
    %1490 = vmatprep.subr.mxu0 0.0
    %1491 = vmatpush1.msra.mxu0 0.0
    %1492 = vmatprep.subr.mxu0 0.0
    %1493 = vmatpush1.msra.mxu0 0.0
    %1494 = vmatprep.subr.mxu0 0.0
    %1495 = vmatpush1.msra.mxu0 0.0
    %1496 = vmatprep.subr.mxu0 0.0
    %1497 = vmatpush1.msra.mxu0 0.0
    %1498 = vmatprep.subr.mxu0 0.0
    %1499 = vmatpush1.msra.mxu0 0.0
    %1500 = vmatprep.subr.mxu0 0.0
    %1501 = vmatpush1.msra.mxu0 0.0
    %1502 = vmatprep.subr.mxu0 0.0
    %1503 = vmatpush1.msra.mxu0 0.0
    %1504 = vmatprep.subr.mxu0 0.0
    %1505 = vmatpush1.msra.mxu0 0.0
    %1506 = vmatprep.mubr.f32.mxu0 0.0
    %v1507 = vand.u32 %v935, 4294901760
    %1508 = vmatmul.mubr.f32.gmra.mrb[0].mxu0 %v1507
    %v1509 = vpop.f32.mrb[0].mxu0
    %v1510 = vadd.f32 %v1387, %v1509
    %v1511 = vpop.f32.mrb[0].mxu0
    %v1512 = vadd.f32 %v1389, %v1511
    %1513 = vmatprep.mubr.f32.mxu0 0.0
    %v1514 = vand.u32 %v938, 4294901760
    %1515 = vmatmul.mubr.f32.gmra.mrb[0].mxu0 %v1514
    %v1516 = vpop.f32.mrb[0].mxu0
    %v1517 = vadd.f32 %v1396, %v1516
    %v1518 = vpop.f32.mrb[0].mxu0
    %v1519 = vadd.f32 %v1398, %v1518
    %1520 = vmatprep.mubr.f32.mxu0 0.0
    %v1521 = vand.u32 %v941, 4294901760
    %1522 = vmatmul.mubr.f32.gmra.mrb[0].mxu0 %v1521
    %v1523 = vpop.f32.mrb[0].mxu0
    %v1524 = vadd.f32 %v1405, %v1523
    %v1525 = vpop.f32.mrb[0].mxu0
    %v1526 = vadd.f32 %v1407, %v1525
    %1527 = vmatprep.mubr.f32.mxu0 0.0
    %v1528 = vand.u32 %v944, 4294901760
    %1529 = vmatmul.mubr.f32.gmra.mrb[0].mxu0 %v1528
    %v1530 = vpop.f32.mrb[0].mxu0
    %v1531 = vadd.f32 %v1414, %v1530
    %v1532 = vpop.f32.mrb[0].mxu0
    %v1533 = vadd.f32 %v1416, %v1532
    %1534 = vdwg.mxu0
    %v1535 = vand.u32 %v906, 4294901760
    %1536 = vmatprep.subr.mxu0 %v1535
    %v1537 = vand.u32 %v905, 4294901760
    %1538 = vmatpush1.msra.mxu0 %v1537
    %v1539 = vand.u32 %v908, 4294901760
    %1540 = vmatprep.subr.mxu0 %v1539
    %v1541 = vand.u32 %v907, 4294901760
    %1542 = vmatpush1.msra.mxu0 %v1541
    %v1543 = vand.u32 %v910, 4294901760
    %1544 = vmatprep.subr.mxu0 %v1543
    %v1545 = vand.u32 %v909, 4294901760
    %1546 = vmatpush1.msra.mxu0 %v1545
    %v1547 = vand.u32 %v912, 4294901760
    %1548 = vmatprep.subr.mxu0 %v1547
    %v1549 = vand.u32 %v911, 4294901760
    %1550 = vmatpush1.msra.mxu0 %v1549
    %1551 = vmatprep.subr.mxu0 0.0
    %1552 = vmatpush1.msra.mxu0 0.0
    %1553 = vmatprep.subr.mxu0 0.0
    %1554 = vmatpush1.msra.mxu0 0.0
    %1555 = vmatprep.subr.mxu0 0.0
    %1556 = vmatpush1.msra.mxu0 0.0
    %1557 = vmatprep.subr.mxu0 0.0
    %1558 = vmatpush1.msra.mxu0 0.0
    %1559 = vmatprep.subr.mxu0 0.0
    %1560 = vmatpush1.msra.mxu0 0.0
    %1561 = vmatprep.subr.mxu0 0.0
    %1562 = vmatpush1.msra.mxu0 0.0
    %1563 = vmatprep.subr.mxu0 0.0
    %1564 = vmatpush1.msra.mxu0 0.0
    %1565 = vmatprep.subr.mxu0 0.0
    %1566 = vmatpush1.msra.mxu0 0.0
    %1567 = vmatprep.subr.mxu0 0.0
    %1568 = vmatpush1.msra.mxu0 0.0
    %1569 = vmatprep.subr.mxu0 0.0
    %1570 = vmatpush1.msra.mxu0 0.0
    %1571 = vmatprep.subr.mxu0 0.0
    %1572 = vmatpush1.msra.mxu0 0.0
    %1573 = vmatprep.subr.mxu0 0.0
    %1574 = vmatpush1.msra.mxu0 0.0
    %1575 = vmatprep.subr.mxu0 0.0
    %1576 = vmatpush1.msra.mxu0 0.0
    %1577 = vmatprep.subr.mxu0 0.0
    %1578 = vmatpush1.msra.mxu0 0.0
    %1579 = vmatprep.subr.mxu0 0.0
    %1580 = vmatpush1.msra.mxu0 0.0
    %1581 = vmatprep.subr.mxu0 0.0
    %1582 = vmatpush1.msra.mxu0 0.0
    %1583 = vmatprep.subr.mxu0 0.0
    %1584 = vmatpush1.msra.mxu0 0.0
    %1585 = vmatprep.subr.mxu0 0.0
    %1586 = vmatpush1.msra.mxu0 0.0
    %1587 = vmatprep.subr.mxu0 0.0
    %1588 = vmatpush1.msra.mxu0 0.0
    %1589 = vmatprep.subr.mxu0 0.0
    %1590 = vmatpush1.msra.mxu0 0.0
    %1591 = vmatprep.subr.mxu0 0.0
    %1592 = vmatpush1.msra.mxu0 0.0
    %1593 = vmatprep.subr.mxu0 0.0
    %1594 = vmatpush1.msra.mxu0 0.0
    %1595 = vmatprep.subr.mxu0 0.0
    %1596 = vmatpush1.msra.mxu0 0.0
    %1597 = vmatprep.subr.mxu0 0.0
    %1598 = vmatpush1.msra.mxu0 0.0
    %1599 = vmatprep.subr.mxu0 0.0
    %1600 = vmatpush1.msra.mxu0 0.0
    %1601 = vmatprep.subr.mxu0 0.0
    %1602 = vmatpush1.msra.mxu0 0.0
    %1603 = vmatprep.subr.mxu0 0.0
    %1604 = vmatpush1.msra.mxu0 0.0
    %1605 = vmatprep.subr.mxu0 0.0
    %1606 = vmatpush1.msra.mxu0 0.0
    %1607 = vmatprep.mubr.f32.mxu0 0.0
    %v1608 = vand.u32 %v935, 4294901760
    %1609 = vmatmul.mubr.f32.gmra.mrb[0].mxu0 %v1608
    %v1610 = vpop.f32.mrb[0].mxu0
    %v1611 = vadd.f32 %v1510, %v1610
    %v1612 = vpop.f32.mrb[0].mxu0
    %v1613 = vadd.f32 %v1512, %v1612
    %1614 = vmatprep.mubr.f32.mxu0 0.0
    %v1615 = vand.u32 %v938, 4294901760
    %1616 = vmatmul.mubr.f32.gmra.mrb[0].mxu0 %v1615
    %v1617 = vpop.f32.mrb[0].mxu0
    %v1618 = vadd.f32 %v1517, %v1617
    %v1619 = vpop.f32.mrb[0].mxu0
    %v1620 = vadd.f32 %v1519, %v1619
    %1621 = vmatprep.mubr.f32.mxu0 0.0
    %v1622 = vand.u32 %v941, 4294901760
    %1623 = vmatmul.mubr.f32.gmra.mrb[0].mxu0 %v1622
    %v1624 = vpop.f32.mrb[0].mxu0
    %v1625 = vadd.f32 %v1524, %v1624
    %v1626 = vpop.f32.mrb[0].mxu0
    %v1627 = vadd.f32 %v1526, %v1626
    %1628 = vmatprep.mubr.f32.mxu0 0.0
    %v1629 = vand.u32 %v944, 4294901760
    %1630 = vmatmul.mubr.f32.gmra.mrb[0].mxu0 %v1629
    %v1631 = vpop.f32.mrb[0].mxu0
    %v1632 = vadd.f32 %v1531, %v1631
    %v1633 = vpop.f32.mrb[0].mxu0
    %v1634 = vadd.f32 %v1533, %v1633
    %1635 = vdwg.mxu0
    %v1636 = vtanh.pop %v1611
    %v1637 = vtanh.pop %v1613
    %v1638 = vtanh.pop %v1618
    %v1639 = vtanh.pop %v1620
    %v1640 = vtanh.pop %v1625
    %v1641 = vtanh.pop %v1627
    %v1642 = vtanh.pop %v1632
    %v1643 = vtanh.pop %v1634
    %s1644 = scalar_lea.vmem [#allocation2], 96
    %v1645 = vld [vmem:[%s1644] sm:$0xff]
    %v1646 = vld [vmem:[%s1644 + $0x8] sm:$0xff]
    %v1647 = vld [vmem:[%s1644 + $0x10] sm:$0xff]
    %v1648 = vld [vmem:[%s1644 + $0x18] sm:$0xff]
    %1650 = vset.pattern.permute.xlu0 0
    %1651 = vperm.xlu0 %1650, %v1645
    %v1652 = vpop.permute.xlu0 %1651
    %1655 = vset.pattern.permute.xlu0 0
    %1656 = vperm.xlu0 %1655, %v1646
    %v1657 = vpop.permute.xlu0 %1656
    %1660 = vset.pattern.permute.xlu0 0
    %1661 = vperm.xlu0 %1660, %v1647
    %v1662 = vpop.permute.xlu0 %1661
    %1665 = vset.pattern.permute.xlu0 0
    %1666 = vperm.xlu0 %1665, %v1648
    %v1667 = vpop.permute.xlu0 %1666
    %v1669 = vmul.f32 %v1652, %v1636
    %v1670 = vmul.f32 %v1652, %v1637
    %v1671 = vmul.f32 %v1657, %v1638
    %v1672 = vmul.f32 %v1657, %v1639
    %v1673 = vmul.f32 %v1662, %v1640
    %v1674 = vmul.f32 %v1662, %v1641
    %v1675 = vmul.f32 %v1667, %v1642
    %v1676 = vmul.f32 %v1667, %v1643
    %v1677 = vadd.f32 %v1669, %v1671
    %v1678 = vadd.f32 %v1677, %v1673
    %v1679 = vadd.f32 %v1678, %v1675
    %v1680 = vrot.slane %v1679, 4
    %v1681 = vadd.f32 %v1679, %v1680
    %v1682 = vrot.slane %v1681, 2
    %v1683 = vadd.f32 %v1681, %v1682
    %v1684 = vrot.slane %v1683, 1
    %v1685 = vadd.f32 %v1683, %v1684
    %v1686 = vadd.f32 %v1670, %v1672
    %v1687 = vadd.f32 %v1686, %v1674
    %v1688 = vadd.f32 %v1687, %v1676
    %v1689 = vrot.slane %v1688, 4
    %v1690 = vadd.f32 %v1688, %v1689
    %v1691 = vrot.slane %v1690, 2
    %v1692 = vadd.f32 %v1690, %v1691
    %v1693 = vrot.slane %v1692, 1
    %v1694 = vadd.f32 %v1692, %v1693
    %v1695 = vld [vmem:[%s140] sm:$0x1]
    %1697 = vset.pattern.permute.xlu0 3
    %1698 = vperm.xlu0 %1697, %v1695
    %v1699 = vpop.permute.xlu0 %1698
    %v1701 = vadd.f32 %v1685, %v1699
    %v1702 = vadd.f32 %v1694, %v1699
    %v1705 = vcombine.low %v1701, %v1702
    %v1707 = vunpack.c.l.s4 1966171168
    %v1708 = vunpack.c.0.s8 %v1707
    %v1709 = vlaneseq
    %v1710 = vshrl.u32 %v1709, 7
    %v1711 = vsub.s32 %v1708, %v1710
    %v1712 = vrot.slane %v1705, %v1711
    %v1714 = vunpack.c.l.s4 1966171168
    %v1715 = vunpack.c.0.s8 %v1714
    %v1716 = vlaneseq
    %v1717 = vshrl.u32 %v1716, 7
    %v1718 = vsub.s32 %v1715, %v1717
    %v1719 = vrot.slane %v1712, %v1718
    %v1721 = vlaneseq
    %vm1722 = vcmp.ge.s32.totalorder %v1721, 0
    %vm1723 = vcmp.lt.s32.totalorder %v1721, 256
    %vm1724 = vmand %vm1722, %vm1723
    %1725 = vst.msk [vmem:[#allocation7] sm:$0x3] %vm1724, %v1719
    // Predicated region
    $region18: #{tpu_custom_call.1} parent=1 // pred_check
      _
    $region19: #{tpu_custom_call.1} parent=1 // pred_check_branch
      %1727 = sbr.rel (0) target = $region21
    $region20: #{tpu_custom_call.1} parent=1 // pred_region
      %s1729 = ssub.s32 32, 32
      %1730 = vsyncadd [#allocation4], %s1729
      %s1732 = sshll.u32 [#allocation7], 4
      %s1733 = int_to_ptr.vmem [resolvable:$true] %s1732
      %1735 = dma.vmem_to_hbm [thread:$0]  %s1733, 32, %s2, [#allocation4]
    $region21: #{tpu_custom_call.1} parent=1 // pred_fallthru
      _
    // Predicated region
    $region22: #{tpu_custom_call.1} parent=1 // pred_check
      _
    $region23: #{tpu_custom_call.1} parent=1 // pred_check_branch
      %1737 = sbr.rel (0) target = $region25
    $region24: #{tpu_custom_call.1} parent=1 // pred_region
      %1738 = dma.done [#allocation4], 32
    $region25: #{tpu_custom_call.1} parent=1 // pred_fallthru
      _
    %1739 = vsyncpa [#allocation3], 1
    %1740 = vsyncpa [#allocation6], 1
    %1741 = vsyncpa [#allocation4], 1

</llo_original>
